<compile_context>
chip_gen: v7x
topology: tpu7x:2x2x1
jax: 0.10.0
libtpu: 0.0.40
codegen_flags: <defaults>
</compile_context>

<pallas_src>
import functools

import jax
import jax.numpy as jnp
from jax import lax
from jax.experimental import pallas as pl
from jax.experimental.pallas import tpu as pltpu

LN_EPS = 1e-3


def _gru_kernel(x_ref, h_ref, wx_ref, wh_ref, gamma_ref, beta_ref, out_ref, *,
                hidden_size):
    # bf16 operands on the MXU with f32 accumulation.
    # x @ Wx + h @ Wh == concat([x, h]) @ W  (W pre-split row-wise in wrapper).
    h = h_ref[...]                                   # f32 state, reused below
    parts = jnp.dot(x_ref[...], wx_ref[...], preferred_element_type=jnp.float32)
    parts = parts + jnp.dot(h.astype(jnp.bfloat16), wh_ref[...],
                            preferred_element_type=jnp.float32)

    # LayerNorm over the full 3H channel axis (channels_last, biased variance,
    # eps inside the sqrt, affine) — matches the PyTorch module.
    # NOTE: when B % tb != 0, padded rows of the last tile run these stats on
    # uninitialized VMEM (possibly NaN lanes); the masked output write discards
    # them, so results are correct.
    mean = jnp.mean(parts, axis=-1, keepdims=True)
    centered = parts - mean
    var = jnp.mean(centered * centered, axis=-1, keepdims=True)
    inv = lax.rsqrt(var + LN_EPS)
    normed = centered * inv * gamma_ref[...] + beta_ref[...]

    # chunk(3, dim=-1) -> reset, cand, update.  Lane-aligned when H % 128 == 0.
    H = hidden_size
    reset = jax.nn.sigmoid(normed[:, 0 * H:1 * H])
    cand = jnp.tanh(reset * normed[:, 1 * H:2 * H])
    update = jax.nn.sigmoid(normed[:, 2 * H:3 * H] - 1.0)

    out_ref[...] = update * cand + (1.0 - update) * h


def _round_up(v, m):
    return ((v + m - 1) // m) * m


def dreamer_v3_gru_cell(x, hidden, w, gamma, beta, *, block_b=256):
    """Forward of DreamerV3GRUCell.  Returns (h, new_hidden) == (h, h)."""
    B, input_size = x.shape
    _, hidden_size = hidden.shape
    three_h = 3 * hidden_size
    assert w.shape == (input_size + hidden_size, three_h)

    # Weights and x streamed as bf16 (MXU operand dtype); accumulation and the
    # state blend stay f32 in the kernel.
    w = w.astype(jnp.bfloat16)
    wx = w[:input_size]
    wh = w[input_size:]
    gamma = gamma.reshape(1, three_h).astype(jnp.float32)
    beta = beta.reshape(1, three_h).astype(jnp.float32)
    x = x.astype(jnp.bfloat16)
    hidden = hidden.astype(jnp.float32)

    # Batch tile: keep >= 2 grid steps whenever possible so the "parallel"
    # batch axis can shard across v7x's two TensorCores; tiles are a multiple
    # of 8 sublanes (128/256 rows for large B, which also feeds v6e/v7x's
    # 256-wide MXU well).
    if B < 16:
        tb = B                                      # single full-extent tile
    else:
        tb = min(block_b, _round_up(pl.cdiv(B, 2), 8))
    grid = (pl.cdiv(B, tb),)

    flops = 2 * B * (input_size + hidden_size) * three_h
    bytes_accessed = (x.size * 2 + hidden.size * 4           # activations in
                      + wx.size * 2 + wh.size * 2            # bf16 weights
                      + gamma.size * 4 + beta.size * 4
                      + B * hidden_size * 4)                 # output
    cost = pl.CostEstimate(flops=flops,
                           transcendentals=3 * B * hidden_size,
                           bytes_accessed=bytes_accessed)

    # VMEM estimate: single-buffered resident bf16 W + double-buffered
    # activation/output tiles + ~5x (tb, 3H) f32 LayerNorm/gate intermediates.
    vmem_est = ((input_size + hidden_size) * three_h * 2
                + 2 * tb * input_size * 2
                + 2 * tb * hidden_size * 4
                + 2 * tb * hidden_size * 4
                + 5 * tb * three_h * 4
                + 4 * three_h * 4)
    try:
        vmem_cap = int(pltpu.get_tpu_info().vmem_capacity_bytes)
    except Exception:
        vmem_cap = 64 * 1024 * 1024     # conservative: v7x per-TensorCore
    vmem_limit = int(min(max(int(1.5 * vmem_est), 32 * 1024 * 1024),
                         int(0.75 * vmem_cap)))

    kernel = functools.partial(_gru_kernel, hidden_size=hidden_size)

    def run(single_buffer_residents):
        resident = ({"pipeline_mode": pl.Buffered(1)}
                    if single_buffer_residents else {})
        return pl.pallas_call(
            kernel,
            out_shape=jax.ShapeDtypeStruct((B, hidden_size), jnp.float32),
            grid=grid,
            in_specs=[
                pl.BlockSpec((tb, input_size), lambda i: (i, 0)),         # x (bf16)
                pl.BlockSpec((tb, hidden_size), lambda i: (i, 0)),        # hidden (f32)
                pl.BlockSpec((input_size, three_h), lambda i: (0, 0),     # Wx resident
                             **resident),
                pl.BlockSpec((hidden_size, three_h), lambda i: (0, 0),    # Wh resident
                             **resident),
                pl.BlockSpec((1, three_h), lambda i: (0, 0), **resident),  # gamma
                pl.BlockSpec((1, three_h), lambda i: (0, 0), **resident),  # beta
            ],
            out_specs=pl.BlockSpec((tb, hidden_size), lambda i: (i, 0)),
            input_output_aliases={1: 0},   # new state overwrites old state buffer
            compiler_params=pltpu.CompilerParams(
                dimension_semantics=("parallel",),
                vmem_limit_bytes=vmem_limit),
            cost_estimate=cost,
        )(x, hidden, wx, wh, gamma, beta)

    try:
        h = run(True)
    except Exception:
        # pl.Buffered(1) unsupported on this jax version: fall back to the
        # default double-buffered resident operands (correct, more VMEM).
        h = run(False)
    return h, h


def _reference(x, hidden, w, gamma, beta):
    """Pure-JAX f32 reference matching the PyTorch module."""
    parts = jnp.concatenate([x, hidden], axis=-1) @ w
    mean = jnp.mean(parts, axis=-1, keepdims=True)
    var = jnp.mean((parts - mean) ** 2, axis=-1, keepdims=True)
    normed = (parts - mean) / jnp.sqrt(var + LN_EPS) * gamma + beta
    H = hidden.shape[-1]
    reset = jax.nn.sigmoid(normed[:, :H])
    cand = jnp.tanh(reset * normed[:, H:2 * H])
    update = jax.nn.sigmoid(normed[:, 2 * H:] - 1.0)
    return update * cand + (1.0 - update) * hidden


if __name__ == "__main__":
    # Small but representative shapes: H a multiple of 128 so the gate slices
    # are lane-aligned, and B=16 so the batch grid has two "parallel" steps.
    batch = 16
    input_size = 64
    hidden_size = 128

    key = jax.random.PRNGKey(0)
    kx, kh, kw = jax.random.split(key, 3)

    x = jax.random.normal(kx, (batch, input_size), dtype=jnp.float32)
    hidden = jax.random.normal(kh, (batch, hidden_size), dtype=jnp.float32)

    # Deterministic 'dreamerv3_normal'-style init: truncated normal scaled by
    # 1/sqrt(fan_avg); LayerNorm affine params gamma=1, beta=0.
    fan_in = input_size + hidden_size
    fan_out = 3 * hidden_size
    scale = 1.0 / jnp.sqrt((fan_in + fan_out) / 2.0)
    w = scale * jax.random.truncated_normal(
        kw, -2.0, 2.0, (fan_in, fan_out), dtype=jnp.float32)
    gamma = jnp.ones((1, 3 * hidden_size), dtype=jnp.float32)
    beta = jnp.zeros((1, 3 * hidden_size), dtype=jnp.float32)

    # Compute the f32 reference BEFORE the kernel call (the kernel may alias /
    # donate the hidden-state buffer).
    ref = _reference(x, hidden, w, gamma, beta)
    jax.block_until_ready(ref)

    h, new_hidden = dreamer_v3_gru_cell(x, hidden, w, gamma, beta)
    jax.block_until_ready((h, new_hidden))

    assert h.shape == (batch, hidden_size)
    # Kernel uses bf16 x / weights with f32 accumulation; allow bf16-level
    # error vs. the full-f32 reference.
    assert jnp.allclose(h, ref, atol=5e-2, rtol=1e-3), "mismatch vs reference"
    assert jnp.allclose(new_hidden, h), "new_hidden must equal h"

    print("KERNEL_OK")
</pallas_src>

<mosaic_0001>
module attributes {stable_mosaic.version = 11 : i64} {
  func.func @_gru_kernel(%arg0: i32, %arg1: memref<8x64xbf16, #tpu.memory_space<vmem>>, %arg2: memref<8x128xf32, #tpu.memory_space<vmem>>, %arg3: memref<64x384xbf16, #tpu.memory_space<vmem>>, %arg4: memref<128x384xbf16, #tpu.memory_space<vmem>>, %arg5: memref<1x384xf32, #tpu.memory_space<vmem>>, %arg6: memref<1x384xf32, #tpu.memory_space<vmem>>, %arg7: memref<8x128xf32, #tpu.memory_space<vmem>>) attributes {dimension_semantics = [#tpu.dimension_semantics<parallel>], iteration_bounds = array<i64: 2>, scalar_prefetch = 0 : i64, scratch_operands = 0 : i64, tpu.core_type = #tpu.core_type<tc>, window_params = [{transform_indices = @transform_0, window_bounds = array<i64: 8, 64>}, {transform_indices = @transform_1, window_bounds = array<i64: 8, 128>}, {pipeline_mode = #tpu.pipeline_mode<synchronous>, transform_indices = @transform_2, window_bounds = array<i64: 64, 384>}, {pipeline_mode = #tpu.pipeline_mode<synchronous>, transform_indices = @transform_3, window_bounds = array<i64: 128, 384>}, {pipeline_mode = #tpu.pipeline_mode<synchronous>, transform_indices = @transform_4, window_bounds = array<i64: 1, 384>}, {pipeline_mode = #tpu.pipeline_mode<synchronous>, transform_indices = @transform_5, window_bounds = array<i64: 1, 384>}, {transform_indices = @transform_6, window_bounds = array<i64: 8, 128>}]} {
    %c0 = arith.constant 0 : index
    %c0_0 = arith.constant 0 : index
    %0 = vector.load %arg2[%c0, %c0_0] : memref<8x128xf32, #tpu.memory_space<vmem>>, vector<8x128xf32>
    %c0_1 = arith.constant 0 : index
    %c0_2 = arith.constant 0 : index
    %1 = vector.load %arg1[%c0_1, %c0_2] : memref<8x64xbf16, #tpu.memory_space<vmem>>, vector<8x64xbf16>
    %c0_3 = arith.constant 0 : index
    %c0_4 = arith.constant 0 : index
    %2 = vector.load %arg3[%c0_3, %c0_4] : memref<64x384xbf16, #tpu.memory_space<vmem>>, vector<64x384xbf16>
    %cst = arith.constant dense<0.000000e+00> : vector<8x384xf32>
    %3 = tpu.matmul %1, %2, %cst {dimension_numbers = #tpu.dot_dimension_numbers<[1], [0], [0], [1], [0, 0, 1, 1], [], []>} : vector<8x64xbf16>, vector<64x384xbf16>, vector<8x384xf32> -> vector<8x384xf32>
    %4 = arith.truncf %0 : vector<8x128xf32> to vector<8x128xbf16>
    %c0_5 = arith.constant 0 : index
    %c0_6 = arith.constant 0 : index
    %5 = vector.load %arg4[%c0_5, %c0_6] : memref<128x384xbf16, #tpu.memory_space<vmem>>, vector<128x384xbf16>
    %cst_7 = arith.constant dense<0.000000e+00> : vector<8x384xf32>
    %6 = tpu.matmul %4, %5, %cst_7 {dimension_numbers = #tpu.dot_dimension_numbers<[1], [0], [0], [1], [0, 0, 1, 1], [], []>} : vector<8x128xbf16>, vector<128x384xbf16>, vector<8x384xf32> -> vector<8x384xf32>
    %7 = arith.addf %3, %6 : vector<8x384xf32>
    %cst_8 = arith.constant dense<0.000000e+00> : vector<8xf32>
    %8 = vector.multi_reduction <add>, %7, %cst_8 [1] : vector<8x384xf32> to vector<8xf32>
    %9 = vector.shape_cast %8 : vector<8xf32> to vector<8x1xf32>
    %cst_9 = arith.constant 3.840000e+02 : f32
    %10 = vector.broadcast %cst_9 : f32 to vector<8x1xf32>
    %11 = arith.divf %9, %10 : vector<8x1xf32>
    %12 = vector.broadcast %11 : vector<8x1xf32> to vector<8x384xf32>
    %13 = arith.subf %7, %12 : vector<8x384xf32>
    %14 = arith.mulf %13, %13 : vector<8x384xf32>
    %cst_10 = arith.constant dense<0.000000e+00> : vector<8xf32>
    %15 = vector.multi_reduction <add>, %14, %cst_10 [1] : vector<8x384xf32> to vector<8xf32>
    %16 = vector.shape_cast %15 : vector<8xf32> to vector<8x1xf32>
    %cst_11 = arith.constant 3.840000e+02 : f32
    %17 = vector.broadcast %cst_11 : f32 to vector<8x1xf32>
    %18 = arith.divf %16, %17 : vector<8x1xf32>
    %cst_12 = arith.constant 1.000000e-03 : f32
    %19 = vector.broadcast %cst_12 : f32 to vector<8x1xf32>
    %20 = arith.addf %18, %19 : vector<8x1xf32>
    %21 = math.rsqrt %20 : vector<8x1xf32>
    %22 = vector.broadcast %21 : vector<8x1xf32> to vector<8x384xf32>
    %23 = arith.mulf %13, %22 : vector<8x384xf32>
    %c0_13 = arith.constant 0 : index
    %c0_14 = arith.constant 0 : index
    %24 = vector.load %arg5[%c0_13, %c0_14] : memref<1x384xf32, #tpu.memory_space<vmem>>, vector<1x384xf32>
    %25 = vector.broadcast %24 : vector<1x384xf32> to vector<8x384xf32>
    %26 = arith.mulf %23, %25 : vector<8x384xf32>
    %c0_15 = arith.constant 0 : index
    %c0_16 = arith.constant 0 : index
    %27 = vector.load %arg6[%c0_15, %c0_16] : memref<1x384xf32, #tpu.memory_space<vmem>>, vector<1x384xf32>
    %28 = vector.broadcast %27 : vector<1x384xf32> to vector<8x384xf32>
    %29 = arith.addf %26, %28 : vector<8x384xf32>
    %30 = vector.extract_strided_slice %29 {offsets = [0, 0], sizes = [8, 128], strides = [1, 1]} : vector<8x384xf32> to vector<8x128xf32>
    %31 = arith.negf %30 : vector<8x128xf32>
    %32 = math.exp %31 : vector<8x128xf32>
    %cst_17 = arith.constant 1.000000e+00 : f32
    %33 = vector.broadcast %cst_17 : f32 to vector<8x128xf32>
    %34 = arith.addf %33, %32 : vector<8x128xf32>
    %35 = arith.divf %33, %34 : vector<8x128xf32>
    %36 = vector.extract_strided_slice %29 {offsets = [0, 128], sizes = [8, 128], strides = [1, 1]} : vector<8x384xf32> to vector<8x128xf32>
    %37 = arith.mulf %35, %36 : vector<8x128xf32>
    %38 = math.tanh %37 : vector<8x128xf32>
    %39 = vector.extract_strided_slice %29 {offsets = [0, 256], sizes = [8, 128], strides = [1, 1]} : vector<8x384xf32> to vector<8x128xf32>
    %cst_18 = arith.constant 1.000000e+00 : f32
    %40 = vector.broadcast %cst_18 : f32 to vector<8x128xf32>
    %41 = arith.subf %39, %40 : vector<8x128xf32>
    %42 = arith.negf %41 : vector<8x128xf32>
    %43 = math.exp %42 : vector<8x128xf32>
    %cst_19 = arith.constant 1.000000e+00 : f32
    %44 = vector.broadcast %cst_19 : f32 to vector<8x128xf32>
    %45 = arith.addf %44, %43 : vector<8x128xf32>
    %46 = arith.divf %44, %45 : vector<8x128xf32>
    %47 = arith.mulf %46, %38 : vector<8x128xf32>
    %cst_20 = arith.constant 1.000000e+00 : f32
    %48 = vector.broadcast %cst_20 : f32 to vector<8x128xf32>
    %49 = arith.subf %48, %46 : vector<8x128xf32>
    %50 = arith.mulf %49, %0 : vector<8x128xf32>
    %51 = arith.addf %47, %50 : vector<8x128xf32>
    %c0_21 = arith.constant 0 : index
    %c0_22 = arith.constant 0 : index
    %52 = vector.load %arg7[%c0_21, %c0_22] : memref<8x128xf32, #tpu.memory_space<vmem>>, vector<8x128xf32>
    tpu.vector_store %arg7[%c0_21, %c0_22], %51 {strides = array<i32>} : memref<8x128xf32, #tpu.memory_space<vmem>>, vector<8x128xf32>,
    return
  }
  func.func @transform_0(%arg0: i32) -> (i32, i32) {
    %c0_i32 = arith.constant 0 : i32
    %c0_i32_0 = arith.constant 0 : i32
    return %arg0, %c0_i32 : i32, i32
  }
  func.func @transform_1(%arg0: i32) -> (i32, i32) {
    %c0_i32 = arith.constant 0 : i32
    %c0_i32_0 = arith.constant 0 : i32
    return %arg0, %c0_i32 : i32, i32
  }
  func.func @transform_2(%arg0: i32) -> (i32, i32) {
    %c0_i32 = arith.constant 0 : i32
    %c0_i32_0 = arith.constant 0 : i32
    %c0_i32_1 = arith.constant 0 : i32
    return %c0_i32, %c0_i32_0 : i32, i32
  }
  func.func @transform_3(%arg0: i32) -> (i32, i32) {
    %c0_i32 = arith.constant 0 : i32
    %c0_i32_0 = arith.constant 0 : i32
    %c0_i32_1 = arith.constant 0 : i32
    return %c0_i32, %c0_i32_0 : i32, i32
  }
  func.func @transform_4(%arg0: i32) -> (i32, i32) {
    %c0_i32 = arith.constant 0 : i32
    %c0_i32_0 = arith.constant 0 : i32
    %c0_i32_1 = arith.constant 0 : i32
    return %c0_i32, %c0_i32_0 : i32, i32
  }
  func.func @transform_5(%arg0: i32) -> (i32, i32) {
    %c0_i32 = arith.constant 0 : i32
    %c0_i32_0 = arith.constant 0 : i32
    %c0_i32_1 = arith.constant 0 : i32
    return %c0_i32, %c0_i32_0 : i32, i32
  }
  func.func @transform_6(%arg0: i32) -> (i32, i32) {
    %c0_i32 = arith.constant 0 : i32
    %c0_i32_0 = arith.constant 0 : i32
    return %arg0, %c0_i32 : i32, i32
  }
}

module attributes {stable_mosaic.version = 11 : i64} {
  func.func @_gru_kernel(%arg0: i32, %arg1: memref<8x64xbf16, #tpu.memory_space<vmem>>, %arg2: memref<8x128xf32, #tpu.memory_space<vmem>>, %arg3: memref<64x384xbf16, #tpu.memory_space<vmem>>, %arg4: memref<128x384xbf16, #tpu.memory_space<vmem>>, %arg5: memref<1x384xf32, #tpu.memory_space<vmem>>, %arg6: memref<1x384xf32, #tpu.memory_space<vmem>>, %arg7: memref<8x128xf32, #tpu.memory_space<vmem>>) attributes {dimension_semantics = [#tpu.dimension_semantics<parallel>], iteration_bounds = array<i64: 2>, scalar_prefetch = 0 : i64, scratch_operands = 0 : i64, tpu.core_type = #tpu.core_type<tc>, window_params = [{transform_indices = @transform_0, window_bounds = array<i64: 8, 64>}, {transform_indices = @transform_1, window_bounds = array<i64: 8, 128>}, {pipeline_mode = #tpu.pipeline_mode<synchronous>, transform_indices = @transform_2, window_bounds = array<i64: 64, 384>}, {pipeline_mode = #tpu.pipeline_mode<synchronous>, transform_indices = @transform_3, window_bounds = array<i64: 128, 384>}, {pipeline_mode = #tpu.pipeline_mode<synchronous>, transform_indices = @transform_4, window_bounds = array<i64: 1, 384>}, {pipeline_mode = #tpu.pipeline_mode<synchronous>, transform_indices = @transform_5, window_bounds = array<i64: 1, 384>}, {transform_indices = @transform_6, window_bounds = array<i64: 8, 128>}]} {
    %c0 = arith.constant 0 : index
    %c0_0 = arith.constant 0 : index
    %0 = vector.load %arg2[%c0, %c0_0] : memref<8x128xf32, #tpu.memory_space<vmem>>, vector<8x128xf32>
    %c0_1 = arith.constant 0 : index
    %c0_2 = arith.constant 0 : index
    %1 = vector.load %arg1[%c0_1, %c0_2] : memref<8x64xbf16, #tpu.memory_space<vmem>>, vector<8x64xbf16>
    %c0_3 = arith.constant 0 : index
    %c0_4 = arith.constant 0 : index
    %2 = vector.load %arg3[%c0_3, %c0_4] : memref<64x384xbf16, #tpu.memory_space<vmem>>, vector<64x384xbf16>
    %cst = arith.constant dense<0.000000e+00> : vector<8x384xf32>
    %3 = tpu.matmul %1, %2, %cst {dimension_numbers = #tpu.dot_dimension_numbers<[1], [0], [0], [1], [0, 0, 1, 1], [], []>} : vector<8x64xbf16>, vector<64x384xbf16>, vector<8x384xf32> -> vector<8x384xf32>
    %4 = arith.truncf %0 : vector<8x128xf32> to vector<8x128xbf16>
    %c0_5 = arith.constant 0 : index
    %c0_6 = arith.constant 0 : index
    %5 = vector.load %arg4[%c0_5, %c0_6] : memref<128x384xbf16, #tpu.memory_space<vmem>>, vector<128x384xbf16>
    %cst_7 = arith.constant dense<0.000000e+00> : vector<8x384xf32>
    %6 = tpu.matmul %4, %5, %cst_7 {dimension_numbers = #tpu.dot_dimension_numbers<[1], [0], [0], [1], [0, 0, 1, 1], [], []>} : vector<8x128xbf16>, vector<128x384xbf16>, vector<8x384xf32> -> vector<8x384xf32>
    %7 = arith.addf %3, %6 : vector<8x384xf32>
    %cst_8 = arith.constant dense<0.000000e+00> : vector<8xf32>
    %8 = vector.multi_reduction <add>, %7, %cst_8 [1] : vector<8x384xf32> to vector<8xf32>
    %9 = vector.shape_cast %8 : vector<8xf32> to vector<8x1xf32>
    %cst_9 = arith.constant 3.840000e+02 : f32
    %10 = vector.broadcast %cst_9 : f32 to vector<8x1xf32>
    %11 = arith.divf %9, %10 : vector<8x1xf32>
    %12 = vector.broadcast %11 : vector<8x1xf32> to vector<8x384xf32>
    %13 = arith.subf %7, %12 : vector<8x384xf32>
    %14 = arith.mulf %13, %13 : vector<8x384xf32>
    %cst_10 = arith.constant dense<0.000000e+00> : vector<8xf32>
    %15 = vector.multi_reduction <add>, %14, %cst_10 [1] : vector<8x384xf32> to vector<8xf32>
    %16 = vector.shape_cast %15 : vector<8xf32> to vector<8x1xf32>
    %cst_11 = arith.constant 3.840000e+02 : f32
    %17 = vector.broadcast %cst_11 : f32 to vector<8x1xf32>
    %18 = arith.divf %16, %17 : vector<8x1xf32>
    %cst_12 = arith.constant 1.000000e-03 : f32
    %19 = vector.broadcast %cst_12 : f32 to vector<8x1xf32>
    %20 = arith.addf %18, %19 : vector<8x1xf32>
    %21 = math.rsqrt %20 : vector<8x1xf32>
    %22 = vector.broadcast %21 : vector<8x1xf32> to vector<8x384xf32>
    %23 = arith.mulf %13, %22 : vector<8x384xf32>
    %c0_13 = arith.constant 0 : index
    %c0_14 = arith.constant 0 : index
    %24 = vector.load %arg5[%c0_13, %c0_14] : memref<1x384xf32, #tpu.memory_space<vmem>>, vector<1x384xf32>
    %25 = vector.broadcast %24 : vector<1x384xf32> to vector<8x384xf32>
    %26 = arith.mulf %23, %25 : vector<8x384xf32>
    %c0_15 = arith.constant 0 : index
    %c0_16 = arith.constant 0 : index
    %27 = vector.load %arg6[%c0_15, %c0_16] : memref<1x384xf32, #tpu.memory_space<vmem>>, vector<1x384xf32>
    %28 = vector.broadcast %27 : vector<1x384xf32> to vector<8x384xf32>
    %29 = arith.addf %26, %28 : vector<8x384xf32>
    %30 = vector.extract_strided_slice %29 {offsets = [0, 0], sizes = [8, 128], strides = [1, 1]} : vector<8x384xf32> to vector<8x128xf32>
    %31 = arith.negf %30 : vector<8x128xf32>
    %32 = math.exp %31 : vector<8x128xf32>
    %cst_17 = arith.constant 1.000000e+00 : f32
    %33 = vector.broadcast %cst_17 : f32 to vector<8x128xf32>
    %34 = arith.addf %33, %32 : vector<8x128xf32>
    %35 = arith.divf %33, %34 : vector<8x128xf32>
    %36 = vector.extract_strided_slice %29 {offsets = [0, 128], sizes = [8, 128], strides = [1, 1]} : vector<8x384xf32> to vector<8x128xf32>
    %37 = arith.mulf %35, %36 : vector<8x128xf32>
    %38 = math.tanh %37 : vector<8x128xf32>
    %39 = vector.extract_strided_slice %29 {offsets = [0, 256], sizes = [8, 128], strides = [1, 1]} : vector<8x384xf32> to vector<8x128xf32>
    %cst_18 = arith.constant 1.000000e+00 : f32
    %40 = vector.broadcast %cst_18 : f32 to vector<8x128xf32>
    %41 = arith.subf %39, %40 : vector<8x128xf32>
    %42 = arith.negf %41 : vector<8x128xf32>
    %43 = math.exp %42 : vector<8x128xf32>
    %cst_19 = arith.constant 1.000000e+00 : f32
    %44 = vector.broadcast %cst_19 : f32 to vector<8x128xf32>
    %45 = arith.addf %44, %43 : vector<8x128xf32>
    %46 = arith.divf %44, %45 : vector<8x128xf32>
    %47 = arith.mulf %46, %38 : vector<8x128xf32>
    %cst_20 = arith.constant 1.000000e+00 : f32
    %48 = vector.broadcast %cst_20 : f32 to vector<8x128xf32>
    %49 = arith.subf %48, %46 : vector<8x128xf32>
    %50 = arith.mulf %49, %0 : vector<8x128xf32>
    %51 = arith.addf %47, %50 : vector<8x128xf32>
    %c0_21 = arith.constant 0 : index
    %c0_22 = arith.constant 0 : index
    %52 = vector.load %arg7[%c0_21, %c0_22] : memref<8x128xf32, #tpu.memory_space<vmem>>, vector<8x128xf32>
    tpu.vector_store %arg7[%c0_21, %c0_22], %51 {strides = array<i32>} : memref<8x128xf32, #tpu.memory_space<vmem>>, vector<8x128xf32>,
    return
  }
  func.func @transform_0(%arg0: i32) -> (i32, i32) {
    %c0_i32 = arith.constant 0 : i32
    %c0_i32_0 = arith.constant 0 : i32
    return %arg0, %c0_i32 : i32, i32
  }
  func.func @transform_1(%arg0: i32) -> (i32, i32) {
    %c0_i32 = arith.constant 0 : i32
    %c0_i32_0 = arith.constant 0 : i32
    return %arg0, %c0_i32 : i32, i32
  }
  func.func @transform_2(%arg0: i32) -> (i32, i32) {
    %c0_i32 = arith.constant 0 : i32
    %c0_i32_0 = arith.constant 0 : i32
    %c0_i32_1 = arith.constant 0 : i32
    return %c0_i32, %c0_i32_0 : i32, i32
  }
  func.func @transform_3(%arg0: i32) -> (i32, i32) {
    %c0_i32 = arith.constant 0 : i32
    %c0_i32_0 = arith.constant 0 : i32
    %c0_i32_1 = arith.constant 0 : i32
    return %c0_i32, %c0_i32_0 : i32, i32
  }
  func.func @transform_4(%arg0: i32) -> (i32, i32) {
    %c0_i32 = arith.constant 0 : i32
    %c0_i32_0 = arith.constant 0 : i32
    %c0_i32_1 = arith.constant 0 : i32
    return %c0_i32, %c0_i32_0 : i32, i32
  }
  func.func @transform_5(%arg0: i32) -> (i32, i32) {
    %c0_i32 = arith.constant 0 : i32
    %c0_i32_0 = arith.constant 0 : i32
    %c0_i32_1 = arith.constant 0 : i32
    return %c0_i32, %c0_i32_0 : i32, i32
  }
  func.func @transform_6(%arg0: i32) -> (i32, i32) {
    %c0_i32 = arith.constant 0 : i32
    %c0_i32_0 = arith.constant 0 : i32
    return %arg0, %c0_i32 : i32, i32
  }
}

</mosaic_0001>

<llo_original>
// kernel: tpu_custom_call.1
$region0: #{tpu_custom_call.1}
  #allocation0 [shape = 'u32[]', space=smem, size = 0x4, offset = 0x4, fixed_abs, tag = 'smem constant byte address 0x4 - core index']
  #allocation1 [shape = 'u32[144,128]{1,0:T(1,128)}', space=vmem, size = 0x12000, scoped, tag = 'internal scratch']
  %s0 = inlined_call_operand.vmem [shape: bf16[16,64], index: 0, kind: input, shape index: {}]
  %s1 = inlined_call_operand.hbm [shape: f32[16,128], index: 1, kind: input, shape index: {}, may-alias: {1,6}]
  %s2 = inlined_call_operand.hbm [shape: bf16[64,384], index: 2, kind: input, shape index: {}]
  %s3 = inlined_call_operand.hbm [shape: bf16[128,384], index: 3, kind: input, shape index: {}]
  %s4 = inlined_call_operand.vmem [shape: f32[1,384], index: 4, kind: input, shape index: {}]
  %s5 = inlined_call_operand.vmem [shape: f32[1,384], index: 5, kind: input, shape index: {}]
  %s6 = inlined_call_operand.hbm [shape: f32[16,128], index: 6, kind: output, shape index: {}, may-alias: {1,6}]
  %s7 = sld [smem:[#allocation0]]
  $region69: #{tpu_custom_call.1} parent=0
    _
  %s9 = ssub.s32 1, %s7
  %s10 = scalar_select 0, %s9, %s7
  $region1: #{tpu_custom_call.1} parent=0
    #allocation2 [shape = 'u8[8192]{0}', space=vmem, size = 0x2000, scoped, tag = 'input window, operand 1']
    #allocation3 [shape = 's32[2]{0}', space=sflag, size = 0x8, scoped, tag = 'scoped memory for tpu_custom_call.1']
    #allocation4 [shape = 's32[2]{0}', space=sflag, size = 0x8, scoped, tag = 'scoped memory for tpu_custom_call.1']
    #allocation5 [shape = 'u8[49152]{0}', space=vmem, size = 0xc000, scoped, tag = 'input window, operand 2, single buffered']
    #allocation6 [shape = 's32[1]{0}', space=sflag, size = 0x4, scoped, tag = 'scoped memory for tpu_custom_call.1']
    #allocation7 [shape = 'u8[98304]{0}', space=vmem, size = 0x18000, scoped, tag = 'input window, operand 3, single buffered']
    #allocation8 [shape = 'u8[8192]{0}', space=vmem, size = 0x2000, scoped, tag = 'output window, operand 0']
    %11 = vsyncpa [#allocation3], 0
    %s12 = scalar_lea.sflag [#allocation3], 1
    %13 = vsyncpa %s12, 0
    %14 = vsyncpa [#allocation6], 0
    %15 = vsyncpa [#allocation4], 0
    %s16 = scalar_lea.sflag [#allocation4], 1
    %17 = vsyncpa %s16, 0
    loop: start=0, step=1, limit=4
    $region2: #{tpu_custom_call.1} parent=1 // loop_pre_header
      _
    $region3: #{tpu_custom_call.1} parent=1 // loop_header
      %s19 = sphi 0, %s23
      %p20 = scmp.ge.s32.totalorder %s19, 4
      %s29 = sphi 0, %s31
      %s32 = sphi 0, %s29
      %s33 = sphi 0, %s32
      %s49 = sphi 0, %s33
      %s55 = sphi 0, %s57
      %s58 = sphi 0, %s55
      %s59 = sphi 0, %s58
      %s75 = sphi 0, %s59
      %s79 = sphi 0, %s79
      %s81 = sphi 0, %s79
      %s82 = sphi 0, %s81
      %s96 = sphi 0, %s82
      %s100 = sphi 0, %s100
      %s102 = sphi 0, %s100
      %s103 = sphi 0, %s102
      %s117 = sphi 0, %s103
      %s121 = sphi 0, %s121
      %s123 = sphi 0, %s121
      %s124 = sphi 0, %s123
      %s138 = sphi 0, %s124
      %s142 = sphi 0, %s142
      %s144 = sphi 0, %s142
      %s145 = sphi 0, %s144
      %s159 = sphi 0, %s145
      %s165 = sphi 0, %s167
      %s168 = sphi 0, %s165
      %s169 = sphi 0, %s168
      %s185 = sphi 0, %s169
    $region4: #{tpu_custom_call.1} parent=1 // loop_header_branch
      %22 = sbr.rel (%p20) target = $region8
    $region5: #{tpu_custom_call.1} parent=1 // loop_body
      %s24 = ssub.s32 %s19, 1
      %s25 = ssub.s32 %s19, 2
      %s26 = sadd.s32 %s19, 1
      %s27 = ssub.s32 %s19, %s26
      %p28 = scmp.eq.s32.totalorder %s27, 0
      %s30 = sadd.s32 %s29, 1
      %s31 = scalar_select %p28, %s29, %s30
      %p34 = pneg %p28
      %p35 = scmp.eq.s32.totalorder %s19, 1
      %p36 = por %p34, %p35
      %p37 = scmp.ne.s32.totalorder %s29, %s32
      %p38 = scmp.eq.s32.totalorder %s19, 0
      %p39 = por %p37, %p38
      %p40 = scmp.ne.s32.totalorder %s29, %s32
      %p41 = scmp.eq.s32.totalorder %s24, 1
      %p42 = por %p40, %p41
      %p43 = scmp.ne.s32.totalorder %s32, %s33
      %p44 = scmp.eq.s32.totalorder %s24, 0
      %p45 = por %p43, %p44
      %p46 = scmp.ne.s32.totalorder %s32, %s33
      %p47 = scmp.eq.s32.totalorder %s25, 1
      %p48 = por %p46, %p47
      %p50 = scmp.ne.s32.totalorder %s33, %s49
      %p51 = scmp.eq.s32.totalorder %s25, 0
      %p52 = por %p50, %p51
      %s53 = ssub.s32 %s19, %s26
      %p54 = scmp.eq.s32.totalorder %s53, 0
      %s56 = sadd.s32 %s55, 1
      %s57 = scalar_select %p54, %s55, %s56
      %p60 = pneg %p54
      %p61 = scmp.eq.s32.totalorder %s19, 1
      %p62 = por %p60, %p61
      %p63 = scmp.ne.s32.totalorder %s55, %s58
      %p64 = scmp.eq.s32.totalorder %s19, 0
      %p65 = por %p63, %p64
      %p66 = scmp.ne.s32.totalorder %s55, %s58
      %p67 = scmp.eq.s32.totalorder %s24, 1
      %p68 = por %p66, %p67
      %p69 = scmp.ne.s32.totalorder %s58, %s59
      %p70 = scmp.eq.s32.totalorder %s24, 0
      %p71 = por %p69, %p70
      %p72 = scmp.ne.s32.totalorder %s58, %s59
      %p73 = scmp.eq.s32.totalorder %s25, 1
      %p74 = por %p72, %p73
      %p76 = scmp.ne.s32.totalorder %s59, %s75
      %p77 = scmp.eq.s32.totalorder %s25, 0
      %p78 = por %p76, %p77
      %s80 = sadd.s32 %s79, 1
      %p83 = scmp.eq.s32.totalorder %s19, 1
      %p84 = scmp.ne.s32.totalorder %s79, %s81
      %p85 = scmp.eq.s32.totalorder %s19, 0
      %p86 = por %p84, %p85
      %p87 = scmp.ne.s32.totalorder %s79, %s81
      %p88 = scmp.eq.s32.totalorder %s24, 1
      %p89 = por %p87, %p88
      %p90 = scmp.ne.s32.totalorder %s81, %s82
      %p91 = scmp.eq.s32.totalorder %s24, 0
      %p92 = por %p90, %p91
      %p93 = scmp.ne.s32.totalorder %s81, %s82
      %p94 = scmp.eq.s32.totalorder %s25, 1
      %p95 = por %p93, %p94
      %p97 = scmp.ne.s32.totalorder %s82, %s96
      %p98 = scmp.eq.s32.totalorder %s25, 0
      %p99 = por %p97, %p98
      %s101 = sadd.s32 %s100, 1
      %p104 = scmp.eq.s32.totalorder %s19, 1
      %p105 = scmp.ne.s32.totalorder %s100, %s102
      %p106 = scmp.eq.s32.totalorder %s19, 0
      %p107 = por %p105, %p106
      %p108 = scmp.ne.s32.totalorder %s100, %s102
      %p109 = scmp.eq.s32.totalorder %s24, 1
      %p110 = por %p108, %p109
      %p111 = scmp.ne.s32.totalorder %s102, %s103
      %p112 = scmp.eq.s32.totalorder %s24, 0
      %p113 = por %p111, %p112
      %p114 = scmp.ne.s32.totalorder %s102, %s103
      %p115 = scmp.eq.s32.totalorder %s25, 1
      %p116 = por %p114, %p115
      %p118 = scmp.ne.s32.totalorder %s103, %s117
      %p119 = scmp.eq.s32.totalorder %s25, 0
      %p120 = por %p118, %p119
      %s122 = sadd.s32 %s121, 1
      %p125 = scmp.eq.s32.totalorder %s19, 1
      %p126 = scmp.ne.s32.totalorder %s121, %s123
      %p127 = scmp.eq.s32.totalorder %s19, 0
      %p128 = por %p126, %p127
      %p129 = scmp.ne.s32.totalorder %s121, %s123
      %p130 = scmp.eq.s32.totalorder %s24, 1
      %p131 = por %p129, %p130
      %p132 = scmp.ne.s32.totalorder %s123, %s124
      %p133 = scmp.eq.s32.totalorder %s24, 0
      %p134 = por %p132, %p133
      %p135 = scmp.ne.s32.totalorder %s123, %s124
      %p136 = scmp.eq.s32.totalorder %s25, 1
      %p137 = por %p135, %p136
      %p139 = scmp.ne.s32.totalorder %s124, %s138
      %p140 = scmp.eq.s32.totalorder %s25, 0
      %p141 = por %p139, %p140
      %s143 = sadd.s32 %s142, 1
      %p146 = scmp.eq.s32.totalorder %s19, 1
      %p147 = scmp.ne.s32.totalorder %s142, %s144
      %p148 = scmp.eq.s32.totalorder %s19, 0
      %p149 = por %p147, %p148
      %p150 = scmp.ne.s32.totalorder %s142, %s144
      %p151 = scmp.eq.s32.totalorder %s24, 1
      %p152 = por %p150, %p151
      %p153 = scmp.ne.s32.totalorder %s144, %s145
      %p154 = scmp.eq.s32.totalorder %s24, 0
      %p155 = por %p153, %p154
      %p156 = scmp.ne.s32.totalorder %s144, %s145
      %p157 = scmp.eq.s32.totalorder %s25, 1
      %p158 = por %p156, %p157
      %p160 = scmp.ne.s32.totalorder %s145, %s159
      %p161 = scmp.eq.s32.totalorder %s25, 0
      %p162 = por %p160, %p161
      %s163 = ssub.s32 %s19, %s26
      %p164 = scmp.eq.s32.totalorder %s163, 0
      %s166 = sadd.s32 %s165, 1
      %s167 = scalar_select %p164, %s165, %s166
      %p170 = pneg %p164
      %p171 = scmp.eq.s32.totalorder %s19, 1
      %p172 = por %p170, %p171
      %p173 = scmp.ne.s32.totalorder %s165, %s168
      %p174 = scmp.eq.s32.totalorder %s19, 0
      %p175 = por %p173, %p174
      %p176 = scmp.ne.s32.totalorder %s165, %s168
      %p177 = scmp.eq.s32.totalorder %s24, 1
      %p178 = por %p176, %p177
      %p179 = scmp.ne.s32.totalorder %s168, %s169
      %p180 = scmp.eq.s32.totalorder %s24, 0
      %p181 = por %p179, %p180
      %p182 = scmp.ne.s32.totalorder %s168, %s169
      %p183 = scmp.eq.s32.totalorder %s25, 1
      %p184 = por %p182, %p183
      %p186 = scmp.ne.s32.totalorder %s169, %s185
      %p187 = scmp.eq.s32.totalorder %s25, 0
      %p188 = por %p186, %p187
      %p189 = scmp.le.s32.totalorder 1, %s19
      %p190 = scmp.lt.s32.totalorder %s19, 3
      %p191 = pnand %p189, %p190
      %p192 = pneg %p191
      // Predicated region
      $region9: #{tpu_custom_call.1} parent=5 // pred_check
        _
      $region10: #{tpu_custom_call.1} parent=5 // pred_check_branch
        %194 = sbr.rel (%p191) target = $region12
      $region11: #{tpu_custom_call.1} parent=5 // pred_region
        %s195 = ssub.s32 %s19, 1
        // Predicated region
        $region13: #{tpu_custom_call.1} parent=11 // pred_check
          %p196 = pneg %p92
        $region14: #{tpu_custom_call.1} parent=11 // pred_check_branch
          %198 = sbr.rel (%p196) target = $region16
        $region15: #{tpu_custom_call.1} parent=11 // pred_region
          %s200 = ssub.s32 1536, 1536
          %201 = vsyncadd [#allocation6], %s200
          %s202 = sshll.u32 [#allocation5], 4
          %s203 = int_to_ptr.vmem [resolvable:$true] %s202
          %208 = dma.hbm_to_vmem [thread:$0]  %s2, 1536, %s203, [#allocation6], 192, 192, 12
        $region16: #{tpu_custom_call.1} parent=11 // pred_fallthru
          _
        // Predicated region
        $region17: #{tpu_custom_call.1} parent=11 // pred_check
          %p209 = pneg %p113
        $region18: #{tpu_custom_call.1} parent=11 // pred_check_branch
          %211 = sbr.rel (%p209) target = $region20
        $region19: #{tpu_custom_call.1} parent=11 // pred_region
          %s213 = ssub.s32 3072, 3072
          %214 = vsyncadd [#allocation6], %s213
          %s215 = sshll.u32 [#allocation7], 4
          %s216 = int_to_ptr.vmem [resolvable:$true] %s215
          %221 = dma.hbm_to_vmem [thread:$0]  %s3, 3072, %s216, [#allocation6], 192, 192, 12
        $region20: #{tpu_custom_call.1} parent=11 // pred_fallthru
          _
        // Predicated region
        $region21: #{tpu_custom_call.1} parent=11 // pred_check
          %p222 = pneg %p134
        $region22: #{tpu_custom_call.1} parent=11 // pred_check_branch
          %224 = sbr.rel (%p222) target = $region24
        $region23: #{tpu_custom_call.1} parent=11 // pred_region
          _
        $region24: #{tpu_custom_call.1} parent=11 // pred_fallthru
          _
        // Predicated region
        $region25: #{tpu_custom_call.1} parent=11 // pred_check
          %p225 = pneg %p155
        $region26: #{tpu_custom_call.1} parent=11 // pred_check_branch
          %227 = sbr.rel (%p225) target = $region28
        $region27: #{tpu_custom_call.1} parent=11 // pred_region
          _
        $region28: #{tpu_custom_call.1} parent=11 // pred_fallthru
          _
      $region12: #{tpu_custom_call.1} parent=5 // pred_fallthru
        _
      %p228 = scmp.lt.s32.totalorder %s19, 2
      // Predicated region
      $region29: #{tpu_custom_call.1} parent=5 // pred_check
        %p229 = pneg %p228
      $region30: #{tpu_custom_call.1} parent=5 // pred_check_branch
        %231 = sbr.rel (%p229) target = $region32
      $region31: #{tpu_custom_call.1} parent=5 // pred_region
        // Predicated region
        $region33: #{tpu_custom_call.1} parent=31 // pred_check
          %p232 = pneg %p39
        $region34: #{tpu_custom_call.1} parent=31 // pred_check_branch
          %234 = sbr.rel (%p232) target = $region36
        $region35: #{tpu_custom_call.1} parent=31 // pred_region
          %p235 = scmp.lt.s32.totalorder %s19, 1
          %s236 = scalar_select %p235, %s19, 1
          %s237 = smul.addr %s236, 4
          %s238 = scalar_lea.vmem %s0, %s237
        $region36: #{tpu_custom_call.1} parent=31 // pred_fallthru
          _
        // Predicated region
        $region37: #{tpu_custom_call.1} parent=31 // pred_check
          %p239 = pneg %p65
        $region38: #{tpu_custom_call.1} parent=31 // pred_check_branch
          %241 = sbr.rel (%p239) target = $region40
        $region39: #{tpu_custom_call.1} parent=31 // pred_region
          %s242 = sand.u32 %s55, 1
          %s243 = scalar_lea.sflag [#allocation3], %s242
          %s244 = sand.u32 %s55, 1
          %s245 = smul.addr %s244, 8
          %s246 = scalar_lea.vmem [#allocation2], %s245
          %s248 = ssub.s32 128, 128
          %249 = vsyncadd %s243, %s248
          %s250 = smul.addr %s19, 128
          %s251 = scalar_lea.hbm %s1, %s250
          %s253 = sshll.u32 %s246, 4
          %s254 = int_to_ptr.vmem [resolvable:$true] %s253
          %256 = dma.hbm_to_vmem [thread:$0]  %s251, 128, %s254, %s243
        $region40: #{tpu_custom_call.1} parent=31 // pred_fallthru
          _
      $region32: #{tpu_custom_call.1} parent=5 // pred_fallthru
        _
      %p257 = scmp.le.s32.totalorder 1, %s19
      %p258 = scmp.lt.s32.totalorder %s19, 3
      %p259 = pnand %p257, %p258
      %p260 = pneg %p259
      // Predicated region
      $region41: #{tpu_custom_call.1} parent=5 // pred_check
        _
      $region42: #{tpu_custom_call.1} parent=5 // pred_check_branch
        %262 = sbr.rel (%p259) target = $region44
      $region43: #{tpu_custom_call.1} parent=5 // pred_region
        %s263 = ssub.s32 %s19, 1
        %s264 = sand.u32 %s58, 1
        %s265 = scalar_lea.sflag [#allocation3], %s264
        %s266 = sand.u32 %s58, 1
        %s267 = smul.addr %s266, 8
        %s268 = scalar_lea.vmem [#allocation2], %s267
        // Predicated region
        $region45: #{tpu_custom_call.1} parent=43 // pred_check
          %p269 = pneg %p71
        $region46: #{tpu_custom_call.1} parent=43 // pred_check_branch
          %271 = sbr.rel (%p269) target = $region48
        $region47: #{tpu_custom_call.1} parent=43 // pred_region
          %272 = dma.done %s265, 128
        $region48: #{tpu_custom_call.1} parent=43 // pred_fallthru
          _
        // Predicated region
        $region49: #{tpu_custom_call.1} parent=43 // pred_check
          %p273 = pneg %p92
        $region50: #{tpu_custom_call.1} parent=43 // pred_check_branch
          %275 = sbr.rel (%p273) target = $region52
        $region51: #{tpu_custom_call.1} parent=43 // pred_region
          %276 = dma.done [#allocation6], 1536
        $region52: #{tpu_custom_call.1} parent=43 // pred_fallthru
          _
        // Predicated region
        $region53: #{tpu_custom_call.1} parent=43 // pred_check
          %p277 = pneg %p113
        $region54: #{tpu_custom_call.1} parent=43 // pred_check_branch
          %279 = sbr.rel (%p277) target = $region56
        $region55: #{tpu_custom_call.1} parent=43 // pred_region
          %280 = dma.done [#allocation6], 3072
        $region56: #{tpu_custom_call.1} parent=43 // pred_fallthru
          _
        %p281 = scmp.lt.s32.totalorder %s24, 1
        %s282 = scalar_select %p281, %s24, 1
        %s283 = smul.addr %s282, 4
        %s284 = scalar_lea.vmem %s0, %s283
        %p285 = pneg %p45
        %p286 = pneg %p42
        %s287 = sand.u32 %s58, 1
        %s288 = scalar_lea.sflag [#allocation3], %s287
        %s289 = sand.u32 %s58, 1
        %s290 = smul.addr %s289, 8
        %s291 = scalar_lea.vmem [#allocation2], %s290
        %p292 = pneg %p71
        %p293 = pneg %p68
        %p294 = pneg %p92
        %p295 = pneg %p89
        %p296 = pneg %p113
        %p297 = pneg %p110
        %p298 = pneg %p134
        %p299 = pneg %p131
        %p300 = pneg %p155
        %p301 = pneg %p152
        %p302 = pneg %p181
        %p303 = pneg %p178
        %s304 = sand.u32 %s168, 1
        %s305 = scalar_lea.sflag [#allocation4], %s304
        %s306 = sand.u32 %s168, 1
        %s307 = smul.addr %s306, 8
        %s308 = scalar_lea.vmem [#allocation8], %s307
        %p309 = scmp.lt.s32.totalorder %s24, 1
        %s310 = scalar_select %p309, %s24, 1
        %s311 = smul.addr %s310, 4
        %s312 = scalar_lea.vmem %s0, %s311
        %v314 = vld [vmem:[%s268] sm:$0xff]
        %v315 = vld [vmem:[%s312] sm:$0xf]
        %v316 = vld [vmem:[#allocation5] sm:$0xff]
        %v317 = vld [vmem:[#allocation5 + $0x8] sm:$0xf]
        %v318 = vld [vmem:[#allocation5 + $0xc] sm:$0xff]
        %v319 = vld [vmem:[#allocation5 + $0x14] sm:$0xf]
        %v320 = vld [vmem:[#allocation5 + $0x18] sm:$0xff]
        %v321 = vld [vmem:[#allocation5 + $0x20] sm:$0xf]
        %v322 = vld [vmem:[#allocation5 + $0x24] sm:$0xff]
        %v323 = vld [vmem:[#allocation5 + $0x2c] sm:$0xf]
        %v324 = vld [vmem:[#allocation5 + $0x30] sm:$0xff]
        %v325 = vld [vmem:[#allocation5 + $0x38] sm:$0xf]
        %v326 = vld [vmem:[#allocation5 + $0x3c] sm:$0xff]
        %v327 = vld [vmem:[#allocation5 + $0x44] sm:$0xf]
        %v328 = vld [vmem:[#allocation5 + $0x48] sm:$0xff]
        %v329 = vld [vmem:[#allocation5 + $0x50] sm:$0xf]
        %v330 = vld [vmem:[#allocation5 + $0x54] sm:$0xff]
        %v331 = vld [vmem:[#allocation5 + $0x5c] sm:$0xf]
        %v332 = vpack.c.bf16 %v314, %v314
        %v333 = vld [vmem:[#allocation7] sm:$0xff]
        %v334 = vld [vmem:[#allocation7 + $0x8] sm:$0xf]
        %v335 = vld [vmem:[#allocation7 + $0xc] sm:$0xff]
        %v336 = vld [vmem:[#allocation7 + $0x14] sm:$0xf]
        %v337 = vld [vmem:[#allocation7 + $0x18] sm:$0xff]
        %v338 = vld [vmem:[#allocation7 + $0x20] sm:$0xf]
        %v339 = vld [vmem:[#allocation7 + $0x24] sm:$0xff]
        %v340 = vld [vmem:[#allocation7 + $0x2c] sm:$0xf]
        %v341 = vld [vmem:[#allocation7 + $0x30] sm:$0xff]
        %v342 = vld [vmem:[#allocation7 + $0x38] sm:$0xf]
        %v343 = vld [vmem:[#allocation7 + $0x3c] sm:$0xff]
        %v344 = vld [vmem:[#allocation7 + $0x44] sm:$0xf]
        %v345 = vld [vmem:[#allocation7 + $0x48] sm:$0xff]
        %v346 = vld [vmem:[#allocation7 + $0x50] sm:$0xf]
        %v347 = vld [vmem:[#allocation7 + $0x54] sm:$0xff]
        %v348 = vld [vmem:[#allocation7 + $0x5c] sm:$0xf]
        %v349 = vld [vmem:[#allocation7 + $0x60] sm:$0xff]
        %v350 = vld [vmem:[#allocation7 + $0x68] sm:$0xf]
        %v351 = vld [vmem:[#allocation7 + $0x6c] sm:$0xff]
        %v352 = vld [vmem:[#allocation7 + $0x74] sm:$0xf]
        %v353 = vld [vmem:[#allocation7 + $0x78] sm:$0xff]
        %v354 = vld [vmem:[#allocation7 + $0x80] sm:$0xf]
        %v355 = vld [vmem:[#allocation7 + $0x84] sm:$0xff]
        %v356 = vld [vmem:[#allocation7 + $0x8c] sm:$0xf]
        %v357 = vld [vmem:[#allocation7 + $0x90] sm:$0xff]
        %v358 = vld [vmem:[#allocation7 + $0x98] sm:$0xf]
        %v359 = vld [vmem:[#allocation7 + $0x9c] sm:$0xff]
        %v360 = vld [vmem:[#allocation7 + $0xa4] sm:$0xf]
        %v361 = vld [vmem:[#allocation7 + $0xa8] sm:$0xff]
        %v362 = vld [vmem:[#allocation7 + $0xb0] sm:$0xf]
        %v363 = vld [vmem:[#allocation7 + $0xb4] sm:$0xff]
        %v364 = vld [vmem:[#allocation7 + $0xbc] sm:$0xf]
        %v397 = vunpack.c.l.b16 %v333
        %v398 = vunpack.c.h.b16 %v333
        %v399 = vunpack.c.l.b16 %v334
        %v400 = vunpack.c.l.b16 %v335
        %v401 = vunpack.c.h.b16 %v335
        %v402 = vunpack.c.l.b16 %v336
        %v403 = vunpack.c.l.b16 %v337
        %v404 = vunpack.c.h.b16 %v337
        %v405 = vunpack.c.l.b16 %v338
        %v406 = vunpack.c.l.b16 %v339
        %v407 = vunpack.c.h.b16 %v339
        %v408 = vunpack.c.l.b16 %v340
        %v409 = vunpack.c.l.b16 %v341
        %v410 = vunpack.c.h.b16 %v341
        %v411 = vunpack.c.l.b16 %v342
        %v412 = vunpack.c.l.b16 %v343
        %v413 = vunpack.c.h.b16 %v343
        %v414 = vunpack.c.l.b16 %v344
        %v415 = vunpack.c.l.b16 %v345
        %v416 = vunpack.c.h.b16 %v345
        %v417 = vunpack.c.l.b16 %v346
        %v418 = vunpack.c.l.b16 %v347
        %v419 = vunpack.c.h.b16 %v347
        %v420 = vunpack.c.l.b16 %v348
        %v421 = vunpack.c.l.b16 %v349
        %v422 = vunpack.c.h.b16 %v349
        %v423 = vunpack.c.l.b16 %v350
        %v424 = vunpack.c.l.b16 %v351
        %v425 = vunpack.c.h.b16 %v351
        %v426 = vunpack.c.l.b16 %v352
        %v427 = vunpack.c.l.b16 %v353
        %v428 = vunpack.c.h.b16 %v353
        %v429 = vunpack.c.l.b16 %v354
        %v430 = vunpack.c.l.b16 %v355
        %v431 = vunpack.c.h.b16 %v355
        %v432 = vunpack.c.l.b16 %v356
        %v433 = vunpack.c.l.b16 %v357
        %v434 = vunpack.c.h.b16 %v357
        %v435 = vunpack.c.l.b16 %v358
        %v436 = vunpack.c.l.b16 %v359
        %v437 = vunpack.c.h.b16 %v359
        %v438 = vunpack.c.l.b16 %v360
        %v439 = vunpack.c.l.b16 %v361
        %v440 = vunpack.c.h.b16 %v361
        %v441 = vunpack.c.l.b16 %v362
        %v442 = vunpack.c.l.b16 %v363
        %v443 = vunpack.c.h.b16 %v363
        %v444 = vunpack.c.l.b16 %v364
        %v445 = vpack.c.b16 %v400, %v397
        %v446 = vpack.c.b16 %v401, %v398
        %v447 = vpack.c.b16 %v402, %v399
        %v448 = vpack.c.b16 %v406, %v403
        %v449 = vpack.c.b16 %v407, %v404
        %v450 = vpack.c.b16 %v408, %v405
        %v451 = vpack.c.b16 %v412, %v409
        %v452 = vpack.c.b16 %v413, %v410
        %v453 = vpack.c.b16 %v414, %v411
        %v454 = vpack.c.b16 %v418, %v415
        %v455 = vpack.c.b16 %v419, %v416
        %v456 = vpack.c.b16 %v420, %v417
        %v457 = vpack.c.b16 %v424, %v421
        %v458 = vpack.c.b16 %v425, %v422
        %v459 = vpack.c.b16 %v426, %v423
        %v460 = vpack.c.b16 %v430, %v427
        %v461 = vpack.c.b16 %v431, %v428
        %v462 = vpack.c.b16 %v432, %v429
        %v463 = vpack.c.b16 %v436, %v433
        %v464 = vpack.c.b16 %v437, %v434
        %v465 = vpack.c.b16 %v438, %v435
        %v466 = vpack.c.b16 %v442, %v439
        %v467 = vpack.c.b16 %v443, %v440
        %v468 = vpack.c.b16 %v444, %v441
        %493 = vmatprep.subr.bf16.mxu0 %v446
        %494 = vmatpush1.bf16.msra.mxu0 %v445
        %495 = vmatprep.subr.bf16.mxu0 %v449
        %496 = vmatpush1.bf16.msra.mxu0 %v448
        %497 = vmatprep.subr.bf16.mxu0 %v452
        %498 = vmatpush1.bf16.msra.mxu0 %v451
        %499 = vmatprep.subr.bf16.mxu0 %v455
        %500 = vmatpush1.bf16.msra.mxu0 %v454
        %501 = vmatprep.subr.bf16.mxu0 %v458
        %502 = vmatpush1.bf16.msra.mxu0 %v457
        %503 = vmatprep.subr.bf16.mxu0 %v461
        %504 = vmatpush1.bf16.msra.mxu0 %v460
        %505 = vmatprep.subr.bf16.mxu0 %v464
        %506 = vmatpush1.bf16.msra.mxu0 %v463
        %507 = vmatprep.subr.bf16.mxu0 %v467
        %508 = vmatpush1.bf16.msra.mxu0 %v466
        %509 = vmatprep.subr.bf16.mxu0 0
        %510 = vmatpush1.bf16.msra.mxu0 0
        %511 = vmatprep.subr.bf16.mxu0 0
        %512 = vmatpush1.bf16.msra.mxu0 0
        %513 = vmatprep.subr.bf16.mxu0 0
        %514 = vmatpush1.bf16.msra.mxu0 0
        %515 = vmatprep.subr.bf16.mxu0 0
        %516 = vmatpush1.bf16.msra.mxu0 0
        %517 = vmatprep.subr.bf16.mxu0 0
        %518 = vmatpush1.bf16.msra.mxu0 0
        %519 = vmatprep.subr.bf16.mxu0 0
        %520 = vmatpush1.bf16.msra.mxu0 0
        %521 = vmatprep.subr.bf16.mxu0 0
        %522 = vmatpush1.bf16.msra.mxu0 0
        %523 = vmatprep.subr.bf16.mxu0 0
        %524 = vmatpush1.bf16.msra.mxu0 0
        %525 = vmatprep.mubr.bf16.mxu0 0
        %526 = vmatmul.mubr.bf16.gmra.mrb[0].mxu0 %v332
        %v527 = vpop.f32.mrb[0].mxu0
        %v528 = vadd.f32 0.0, %v527
        %v529 = vpop.f32.mrb[0].mxu0
        %v530 = vadd.f32 0.0, %v529
        %v531 = vpop.f32.mrb[0].mxu0
        %v532 = vpop.f32.mrb[0].mxu0
        %533 = vdwg.mxu0
        %534 = vmatprep.subr.bf16.mxu0 0
        %535 = vmatpush1.bf16.msra.mxu0 %v447
        %536 = vmatprep.subr.bf16.mxu0 0
        %537 = vmatpush1.bf16.msra.mxu0 %v450
        %538 = vmatprep.subr.bf16.mxu0 0
        %539 = vmatpush1.bf16.msra.mxu0 %v453
        %540 = vmatprep.subr.bf16.mxu0 0
        %541 = vmatpush1.bf16.msra.mxu0 %v456
        %542 = vmatprep.subr.bf16.mxu0 0
        %543 = vmatpush1.bf16.msra.mxu0 %v459
        %544 = vmatprep.subr.bf16.mxu0 0
        %545 = vmatpush1.bf16.msra.mxu0 %v462
        %546 = vmatprep.subr.bf16.mxu0 0
        %547 = vmatpush1.bf16.msra.mxu0 %v465
        %548 = vmatprep.subr.bf16.mxu0 0
        %549 = vmatpush1.bf16.msra.mxu0 %v468
        %550 = vmatprep.subr.bf16.mxu0 0
        %551 = vmatpush1.bf16.msra.mxu0 0
        %552 = vmatprep.subr.bf16.mxu0 0
        %553 = vmatpush1.bf16.msra.mxu0 0
        %554 = vmatprep.subr.bf16.mxu0 0
        %555 = vmatpush1.bf16.msra.mxu0 0
        %556 = vmatprep.subr.bf16.mxu0 0
        %557 = vmatpush1.bf16.msra.mxu0 0
        %558 = vmatprep.subr.bf16.mxu0 0
        %559 = vmatpush1.bf16.msra.mxu0 0
        %560 = vmatprep.subr.bf16.mxu0 0
        %561 = vmatpush1.bf16.msra.mxu0 0
        %562 = vmatprep.subr.bf16.mxu0 0
        %563 = vmatpush1.bf16.msra.mxu0 0
        %564 = vmatprep.subr.bf16.mxu0 0
        %565 = vmatpush1.bf16.msra.mxu0 0
        %566 = vmatprep.mubr.bf16.mxu0 0
        %567 = vmatmul.mubr.bf16.gmra.mrb[0].mxu0 %v332
        %v568 = vpop.f32.mrb[0].mxu0
        %v569 = vadd.f32 0.0, %v568
        %v570 = vpop.f32.mrb[0].mxu0
        %v571 = vpop.f32.mrb[0].mxu0
        %v572 = vpop.f32.mrb[0].mxu0
        %573 = vdwg.mxu0
        %v590 = vunpack.c.l.b16 %v316
        %v591 = vunpack.c.h.b16 %v316
        %v592 = vunpack.c.l.b16 %v317
        %v593 = vunpack.c.l.b16 %v318
        %v594 = vunpack.c.h.b16 %v318
        %v595 = vunpack.c.l.b16 %v319
        %v596 = vunpack.c.l.b16 %v320
        %v597 = vunpack.c.h.b16 %v320
        %v598 = vunpack.c.l.b16 %v321
        %v599 = vunpack.c.l.b16 %v322
        %v600 = vunpack.c.h.b16 %v322
        %v601 = vunpack.c.l.b16 %v323
        %v602 = vunpack.c.l.b16 %v324
        %v603 = vunpack.c.h.b16 %v324
        %v604 = vunpack.c.l.b16 %v325
        %v605 = vunpack.c.l.b16 %v326
        %v606 = vunpack.c.h.b16 %v326
        %v607 = vunpack.c.l.b16 %v327
        %v608 = vunpack.c.l.b16 %v328
        %v609 = vunpack.c.h.b16 %v328
        %v610 = vunpack.c.l.b16 %v329
        %v611 = vunpack.c.l.b16 %v330
        %v612 = vunpack.c.h.b16 %v330
        %v613 = vunpack.c.l.b16 %v331
        %v614 = vpack.c.b16 %v593, %v590
        %v615 = vpack.c.b16 %v594, %v591
        %v616 = vpack.c.b16 %v595, %v592
        %v617 = vpack.c.b16 %v599, %v596
        %v618 = vpack.c.b16 %v600, %v597
        %v619 = vpack.c.b16 %v601, %v598
        %v620 = vpack.c.b16 %v605, %v602
        %v621 = vpack.c.b16 %v606, %v603
        %v622 = vpack.c.b16 %v607, %v604
        %v623 = vpack.c.b16 %v611, %v608
        %v624 = vpack.c.b16 %v612, %v609
        %v625 = vpack.c.b16 %v613, %v610
        %vm638 = vcmask 523264
        %v640 = vsel %vm638, %v315, 0
        %642 = vmatprep.subr.bf16.mxu0 %v615
        %643 = vmatpush1.bf16.msra.mxu0 %v614
        %644 = vmatprep.subr.bf16.mxu0 %v618
        %645 = vmatpush1.bf16.msra.mxu0 %v617
        %646 = vmatprep.subr.bf16.mxu0 %v621
        %647 = vmatpush1.bf16.msra.mxu0 %v620
        %648 = vmatprep.subr.bf16.mxu0 %v624
        %649 = vmatpush1.bf16.msra.mxu0 %v623
        %650 = vmatprep.subr.bf16.mxu0 0
        %651 = vmatpush1.bf16.msra.mxu0 0
        %652 = vmatprep.subr.bf16.mxu0 0
        %653 = vmatpush1.bf16.msra.mxu0 0
        %654 = vmatprep.subr.bf16.mxu0 0
        %655 = vmatpush1.bf16.msra.mxu0 0
        %656 = vmatprep.subr.bf16.mxu0 0
        %657 = vmatpush1.bf16.msra.mxu0 0
        %658 = vmatprep.subr.bf16.mxu0 0
        %659 = vmatpush1.bf16.msra.mxu0 0
        %660 = vmatprep.subr.bf16.mxu0 0
        %661 = vmatpush1.bf16.msra.mxu0 0
        %662 = vmatprep.subr.bf16.mxu0 0
        %663 = vmatpush1.bf16.msra.mxu0 0
        %664 = vmatprep.subr.bf16.mxu0 0
        %665 = vmatpush1.bf16.msra.mxu0 0
        %666 = vmatprep.subr.bf16.mxu0 0
        %667 = vmatpush1.bf16.msra.mxu0 0
        %668 = vmatprep.subr.bf16.mxu0 0
        %669 = vmatpush1.bf16.msra.mxu0 0
        %670 = vmatprep.subr.bf16.mxu0 0
        %671 = vmatpush1.bf16.msra.mxu0 0
        %672 = vmatprep.subr.bf16.mxu0 0
        %673 = vmatpush1.bf16.msra.mxu0 0
        %674 = vmatprep.mubr.bf16.mxu0 0
        %675 = vmatmul.mubr.bf16.gmra.mrb[0].mxu0 %v640
        %v676 = vpop.f32.mrb[0].mxu0
        %v677 = vadd.f32 %v528, %v676
        %v678 = vpop.f32.mrb[0].mxu0
        %v679 = vadd.f32 %v530, %v678
        %v680 = vpop.f32.mrb[0].mxu0
        %v681 = vpop.f32.mrb[0].mxu0
        %682 = vdwg.mxu0
        %683 = vmatprep.subr.bf16.mxu0 0
        %684 = vmatpush1.bf16.msra.mxu0 %v616
        %685 = vmatprep.subr.bf16.mxu0 0
        %686 = vmatpush1.bf16.msra.mxu0 %v619
        %687 = vmatprep.subr.bf16.mxu0 0
        %688 = vmatpush1.bf16.msra.mxu0 %v622
        %689 = vmatprep.subr.bf16.mxu0 0
        %690 = vmatpush1.bf16.msra.mxu0 %v625
        %691 = vmatprep.subr.bf16.mxu0 0
        %692 = vmatpush1.bf16.msra.mxu0 0
        %693 = vmatprep.subr.bf16.mxu0 0
        %694 = vmatpush1.bf16.msra.mxu0 0
        %695 = vmatprep.subr.bf16.mxu0 0
        %696 = vmatpush1.bf16.msra.mxu0 0
        %697 = vmatprep.subr.bf16.mxu0 0
        %698 = vmatpush1.bf16.msra.mxu0 0
        %699 = vmatprep.subr.bf16.mxu0 0
        %700 = vmatpush1.bf16.msra.mxu0 0
        %701 = vmatprep.subr.bf16.mxu0 0
        %702 = vmatpush1.bf16.msra.mxu0 0
        %703 = vmatprep.subr.bf16.mxu0 0
        %704 = vmatpush1.bf16.msra.mxu0 0
        %705 = vmatprep.subr.bf16.mxu0 0
        %706 = vmatpush1.bf16.msra.mxu0 0
        %707 = vmatprep.subr.bf16.mxu0 0
        %708 = vmatpush1.bf16.msra.mxu0 0
        %709 = vmatprep.subr.bf16.mxu0 0
        %710 = vmatpush1.bf16.msra.mxu0 0
        %711 = vmatprep.subr.bf16.mxu0 0
        %712 = vmatpush1.bf16.msra.mxu0 0
        %713 = vmatprep.subr.bf16.mxu0 0
        %714 = vmatpush1.bf16.msra.mxu0 0
        %715 = vmatprep.mubr.bf16.mxu0 0
        %716 = vmatmul.mubr.bf16.gmra.mrb[0].mxu0 %v640
        %v717 = vpop.f32.mrb[0].mxu0
        %v718 = vadd.f32 %v569, %v717
        %v719 = vpop.f32.mrb[0].mxu0
        %v720 = vpop.f32.mrb[0].mxu0
        %v721 = vpop.f32.mrb[0].mxu0
        %722 = vdwg.mxu0
        %v723 = vadd.f32 %v677, %v679
        %v724 = vadd.f32 %v723, %v718
        %725 = vadd.xlane.f32.xlu0 %v724
        %v726 = vpop.xlane.xlu0 %725
        %v727 = vrcp.pop 384.0
        %v728 = vmul.f32 %v726, %v727
        %v729 = vsub.f32 %v677, %v728
        %v730 = vsub.f32 %v679, %v728
        %v731 = vsub.f32 %v718, %v728
        %v732 = vmul.f32 %v729, %v729
        %v733 = vmul.f32 %v730, %v730
        %v734 = vmul.f32 %v731, %v731
        %v735 = vadd.f32 %v732, %v733
        %v736 = vadd.f32 %v735, %v734
        %737 = vadd.xlane.f32.xlu0 %v736
        %v738 = vpop.xlane.xlu0 %737
        %v739 = vmul.f32 %v738, %v727
        %v740 = vadd.f32 %v739, 0.001
        %v741 = vrsqrt.pop %v740
        %v742 = vmul.f32 %v729, %v741
        %v743 = vmul.f32 %v730, %v741
        %v744 = vmul.f32 %v731, %v741
        %v745 = vld [vmem:[%s4] sm:$0x7]
        %v747 = vlaneseq
        %v748 = vshrl.u32 %v747, 7
        %v749 = vsub.s32 0, %v748
        %v750 = vrot.slane %v745, %v749
        %v751 = vlaneseq
        %v752 = vshrl.u32 %v751, 7
        %v753 = vsub.s32 1, %v752
        %v754 = vrot.slane %v745, %v753
        %v755 = vlaneseq
        %v756 = vshrl.u32 %v755, 7
        %v757 = vsub.s32 2, %v756
        %v758 = vrot.slane %v745, %v757
        %v762 = vmul.f32 %v742, %v750
        %v763 = vmul.f32 %v743, %v754
        %v764 = vmul.f32 %v744, %v758
        %v765 = vld [vmem:[%s5] sm:$0x7]
        %v767 = vlaneseq
        %v768 = vshrl.u32 %v767, 7
        %v769 = vsub.s32 0, %v768
        %v770 = vrot.slane %v765, %v769
        %v771 = vlaneseq
        %v772 = vshrl.u32 %v771, 7
        %v773 = vsub.s32 1, %v772
        %v774 = vrot.slane %v765, %v773
        %v775 = vlaneseq
        %v776 = vshrl.u32 %v775, 7
        %v777 = vsub.s32 2, %v776
        %v778 = vrot.slane %v765, %v777
        %v782 = vadd.f32 %v762, %v770
        %v783 = vadd.f32 %v763, %v774
        %v784 = vadd.f32 %v764, %v778
        %v785 = vxor.u32 %v782, 2147483648
        %v786 = vmul.f32 %v785, 1.442695
        %v787 = vpow.pop %v786
        %v788 = vadd.f32 %v787, 1.0
        %v789 = vrcp.pop %v788
        %v790 = vmul.f32 1.0, %v789
        %v791 = vmul.f32 %v790, %v783
        %v792 = vtanh.pop %v791
        %v793 = vsub.f32 %v784, 1.0
        %v794 = vxor.u32 %v793, 2147483648
        %v795 = vmul.f32 %v794, 1.442695
        %v796 = vpow.pop %v795
        %v797 = vadd.f32 %v796, 1.0
        %v798 = vrcp.pop %v797
        %v799 = vmul.f32 1.0, %v798
        %v800 = vmul.f32 %v799, %v792
        %v801 = vsub.f32 1.0, %v799
        %v802 = vmul.f32 %v801, %v314
        %v803 = vadd.f32 %v800, %v802
        %804 = vst [vmem:[%s308] sm:$0xff] %v803
        %s805 = sand.u32 %s168, 1
        %s806 = scalar_lea.sflag [#allocation4], %s805
        %s807 = sand.u32 %s168, 1
        %s808 = smul.addr %s807, 8
        %s809 = scalar_lea.vmem [#allocation8], %s808
        // Predicated region
        $region57: #{tpu_custom_call.1} parent=43 // pred_check
          %p810 = pneg %p178
        $region58: #{tpu_custom_call.1} parent=43 // pred_check_branch
          %812 = sbr.rel (%p810) target = $region60
        $region59: #{tpu_custom_call.1} parent=43 // pred_region
          %s814 = ssub.s32 128, 128
          %815 = vsyncadd %s806, %s814
          %s816 = smul.addr %s24, 128
          %s817 = scalar_lea.hbm %s6, %s816
          %s819 = sshll.u32 %s809, 4
          %s820 = int_to_ptr.vmem [resolvable:$true] %s819
          %822 = dma.vmem_to_hbm [thread:$0]  %s820, 128, %s817, %s806
        $region60: #{tpu_custom_call.1} parent=43 // pred_fallthru
          _
      $region44: #{tpu_custom_call.1} parent=5 // pred_fallthru
        _
      %p823 = scmp.le.s32.totalorder 2, %s19
      // Predicated region
      $region61: #{tpu_custom_call.1} parent=5 // pred_check
        %p824 = pneg %p823
      $region62: #{tpu_custom_call.1} parent=5 // pred_check_branch
        %826 = sbr.rel (%p824) target = $region64
      $region63: #{tpu_custom_call.1} parent=5 // pred_region
        %s827 = ssub.s32 %s19, 2
        // Predicated region
        $region65: #{tpu_custom_call.1} parent=63 // pred_check
          %p828 = pneg %p184
        $region66: #{tpu_custom_call.1} parent=63 // pred_check_branch
          %830 = sbr.rel (%p828) target = $region68
        $region67: #{tpu_custom_call.1} parent=63 // pred_region
          %s831 = sand.u32 %s169, 1
          %s832 = scalar_lea.sflag [#allocation4], %s831
          %s833 = sand.u32 %s169, 1
          %s834 = smul.addr %s833, 8
          %s835 = scalar_lea.vmem [#allocation8], %s834
          %836 = dma.done %s832, 128
        $region68: #{tpu_custom_call.1} parent=63 // pred_fallthru
          _
      $region64: #{tpu_custom_call.1} parent=5 // pred_fallthru
        _
    $region6: #{tpu_custom_call.1} parent=1 // loop_footer
      %s23 = sadd.s32 1, %s19
    $region7: #{tpu_custom_call.1} parent=1 // loop_footer_branch
      %18 = sbr.rel target = $region3
    $region8: #{tpu_custom_call.1} parent=1 // loop_exit
      _
    %837 = vsyncpa [#allocation3], 1
    %s838 = scalar_lea.sflag [#allocation3], 1
    %839 = vsyncpa %s838, 1
    %840 = vsyncpa [#allocation6], 1
    %841 = vsyncpa [#allocation4], 1
    %s842 = scalar_lea.sflag [#allocation4], 1
    %843 = vsyncpa %s842, 1

// kernel: tpu_custom_call.1
$region0: #{tpu_custom_call.1}
  #allocation0 [shape = 'u32[]', space=smem, size = 0x4, offset = 0x4, fixed_abs, tag = 'smem constant byte address 0x4 - core index']
  #allocation1 [shape = 'u32[144,128]{1,0:T(1,128)}', space=vmem, size = 0x12000, scoped, tag = 'internal scratch']
  %s0 = inlined_call_operand.vmem [shape: bf16[16,64], index: 0, kind: input, shape index: {}]
  %s1 = inlined_call_operand.hbm [shape: f32[16,128], index: 1, kind: input, shape index: {}, may-alias: {1,6}]
  %s2 = inlined_call_operand.hbm [shape: bf16[64,384], index: 2, kind: input, shape index: {}]
  %s3 = inlined_call_operand.hbm [shape: bf16[128,384], index: 3, kind: input, shape index: {}]
  %s4 = inlined_call_operand.vmem [shape: f32[1,384], index: 4, kind: input, shape index: {}]
  %s5 = inlined_call_operand.vmem [shape: f32[1,384], index: 5, kind: input, shape index: {}]
  %s6 = inlined_call_operand.hbm [shape: f32[16,128], index: 6, kind: output, shape index: {}, may-alias: {1,6}]
  %s7 = sld [smem:[#allocation0]]
  $region69: #{tpu_custom_call.1} parent=0
    _
  %s9 = ssub.s32 1, %s7
  %s10 = scalar_select 0, %s9, %s7
  $region1: #{tpu_custom_call.1} parent=0
    #allocation2 [shape = 'u8[8192]{0}', space=vmem, size = 0x2000, scoped, tag = 'input window, operand 1']
    #allocation3 [shape = 's32[2]{0}', space=sflag, size = 0x8, scoped, tag = 'scoped memory for tpu_custom_call.1']
    #allocation4 [shape = 's32[2]{0}', space=sflag, size = 0x8, scoped, tag = 'scoped memory for tpu_custom_call.1']
    #allocation5 [shape = 'u8[49152]{0}', space=vmem, size = 0xc000, scoped, tag = 'input window, operand 2, single buffered']
    #allocation6 [shape = 's32[1]{0}', space=sflag, size = 0x4, scoped, tag = 'scoped memory for tpu_custom_call.1']
    #allocation7 [shape = 'u8[98304]{0}', space=vmem, size = 0x18000, scoped, tag = 'input window, operand 3, single buffered']
    #allocation8 [shape = 'u8[8192]{0}', space=vmem, size = 0x2000, scoped, tag = 'output window, operand 0']
    %11 = vsyncpa [#allocation3], 0
    %s12 = scalar_lea.sflag [#allocation3], 1
    %13 = vsyncpa %s12, 0
    %14 = vsyncpa [#allocation6], 0
    %15 = vsyncpa [#allocation4], 0
    %s16 = scalar_lea.sflag [#allocation4], 1
    %17 = vsyncpa %s16, 0
    loop: start=0, step=1, limit=4
    $region2: #{tpu_custom_call.1} parent=1 // loop_pre_header
      _
    $region3: #{tpu_custom_call.1} parent=1 // loop_header
      %s19 = sphi 0, %s23
      %p20 = scmp.ge.s32.totalorder %s19, 4
      %s29 = sphi 0, %s31
      %s32 = sphi 0, %s29
      %s33 = sphi 0, %s32
      %s49 = sphi 0, %s33
      %s55 = sphi 0, %s57
      %s58 = sphi 0, %s55
      %s59 = sphi 0, %s58
      %s75 = sphi 0, %s59
      %s79 = sphi 0, %s79
      %s81 = sphi 0, %s79
      %s82 = sphi 0, %s81
      %s96 = sphi 0, %s82
      %s100 = sphi 0, %s100
      %s102 = sphi 0, %s100
      %s103 = sphi 0, %s102
      %s117 = sphi 0, %s103
      %s121 = sphi 0, %s121
      %s123 = sphi 0, %s121
      %s124 = sphi 0, %s123
      %s138 = sphi 0, %s124
      %s142 = sphi 0, %s142
      %s144 = sphi 0, %s142
      %s145 = sphi 0, %s144
      %s159 = sphi 0, %s145
      %s165 = sphi 0, %s167
      %s168 = sphi 0, %s165
      %s169 = sphi 0, %s168
      %s185 = sphi 0, %s169
    $region4: #{tpu_custom_call.1} parent=1 // loop_header_branch
      %22 = sbr.rel (%p20) target = $region8
    $region5: #{tpu_custom_call.1} parent=1 // loop_body
      %s24 = ssub.s32 %s19, 1
      %s25 = ssub.s32 %s19, 2
      %s26 = sadd.s32 %s19, 1
      %s27 = ssub.s32 %s19, %s26
      %p28 = scmp.eq.s32.totalorder %s27, 0
      %s30 = sadd.s32 %s29, 1
      %s31 = scalar_select %p28, %s29, %s30
      %p34 = pneg %p28
      %p35 = scmp.eq.s32.totalorder %s19, 1
      %p36 = por %p34, %p35
      %p37 = scmp.ne.s32.totalorder %s29, %s32
      %p38 = scmp.eq.s32.totalorder %s19, 0
      %p39 = por %p37, %p38
      %p40 = scmp.ne.s32.totalorder %s29, %s32
      %p41 = scmp.eq.s32.totalorder %s24, 1
      %p42 = por %p40, %p41
      %p43 = scmp.ne.s32.totalorder %s32, %s33
      %p44 = scmp.eq.s32.totalorder %s24, 0
      %p45 = por %p43, %p44
      %p46 = scmp.ne.s32.totalorder %s32, %s33
      %p47 = scmp.eq.s32.totalorder %s25, 1
      %p48 = por %p46, %p47
      %p50 = scmp.ne.s32.totalorder %s33, %s49
      %p51 = scmp.eq.s32.totalorder %s25, 0
      %p52 = por %p50, %p51
      %s53 = ssub.s32 %s19, %s26
      %p54 = scmp.eq.s32.totalorder %s53, 0
      %s56 = sadd.s32 %s55, 1
      %s57 = scalar_select %p54, %s55, %s56
      %p60 = pneg %p54
      %p61 = scmp.eq.s32.totalorder %s19, 1
      %p62 = por %p60, %p61
      %p63 = scmp.ne.s32.totalorder %s55, %s58
      %p64 = scmp.eq.s32.totalorder %s19, 0
      %p65 = por %p63, %p64
      %p66 = scmp.ne.s32.totalorder %s55, %s58
      %p67 = scmp.eq.s32.totalorder %s24, 1
      %p68 = por %p66, %p67
      %p69 = scmp.ne.s32.totalorder %s58, %s59
      %p70 = scmp.eq.s32.totalorder %s24, 0
      %p71 = por %p69, %p70
      %p72 = scmp.ne.s32.totalorder %s58, %s59
      %p73 = scmp.eq.s32.totalorder %s25, 1
      %p74 = por %p72, %p73
      %p76 = scmp.ne.s32.totalorder %s59, %s75
      %p77 = scmp.eq.s32.totalorder %s25, 0
      %p78 = por %p76, %p77
      %s80 = sadd.s32 %s79, 1
      %p83 = scmp.eq.s32.totalorder %s19, 1
      %p84 = scmp.ne.s32.totalorder %s79, %s81
      %p85 = scmp.eq.s32.totalorder %s19, 0
      %p86 = por %p84, %p85
      %p87 = scmp.ne.s32.totalorder %s79, %s81
      %p88 = scmp.eq.s32.totalorder %s24, 1
      %p89 = por %p87, %p88
      %p90 = scmp.ne.s32.totalorder %s81, %s82
      %p91 = scmp.eq.s32.totalorder %s24, 0
      %p92 = por %p90, %p91
      %p93 = scmp.ne.s32.totalorder %s81, %s82
      %p94 = scmp.eq.s32.totalorder %s25, 1
      %p95 = por %p93, %p94
      %p97 = scmp.ne.s32.totalorder %s82, %s96
      %p98 = scmp.eq.s32.totalorder %s25, 0
      %p99 = por %p97, %p98
      %s101 = sadd.s32 %s100, 1
      %p104 = scmp.eq.s32.totalorder %s19, 1
      %p105 = scmp.ne.s32.totalorder %s100, %s102
      %p106 = scmp.eq.s32.totalorder %s19, 0
      %p107 = por %p105, %p106
      %p108 = scmp.ne.s32.totalorder %s100, %s102
      %p109 = scmp.eq.s32.totalorder %s24, 1
      %p110 = por %p108, %p109
      %p111 = scmp.ne.s32.totalorder %s102, %s103
      %p112 = scmp.eq.s32.totalorder %s24, 0
      %p113 = por %p111, %p112
      %p114 = scmp.ne.s32.totalorder %s102, %s103
      %p115 = scmp.eq.s32.totalorder %s25, 1
      %p116 = por %p114, %p115
      %p118 = scmp.ne.s32.totalorder %s103, %s117
      %p119 = scmp.eq.s32.totalorder %s25, 0
      %p120 = por %p118, %p119
      %s122 = sadd.s32 %s121, 1
      %p125 = scmp.eq.s32.totalorder %s19, 1
      %p126 = scmp.ne.s32.totalorder %s121, %s123
      %p127 = scmp.eq.s32.totalorder %s19, 0
      %p128 = por %p126, %p127
      %p129 = scmp.ne.s32.totalorder %s121, %s123
      %p130 = scmp.eq.s32.totalorder %s24, 1
      %p131 = por %p129, %p130
      %p132 = scmp.ne.s32.totalorder %s123, %s124
      %p133 = scmp.eq.s32.totalorder %s24, 0
      %p134 = por %p132, %p133
      %p135 = scmp.ne.s32.totalorder %s123, %s124
      %p136 = scmp.eq.s32.totalorder %s25, 1
      %p137 = por %p135, %p136
      %p139 = scmp.ne.s32.totalorder %s124, %s138
      %p140 = scmp.eq.s32.totalorder %s25, 0
      %p141 = por %p139, %p140
      %s143 = sadd.s32 %s142, 1
      %p146 = scmp.eq.s32.totalorder %s19, 1
      %p147 = scmp.ne.s32.totalorder %s142, %s144
      %p148 = scmp.eq.s32.totalorder %s19, 0
      %p149 = por %p147, %p148
      %p150 = scmp.ne.s32.totalorder %s142, %s144
      %p151 = scmp.eq.s32.totalorder %s24, 1
      %p152 = por %p150, %p151
      %p153 = scmp.ne.s32.totalorder %s144, %s145
      %p154 = scmp.eq.s32.totalorder %s24, 0
      %p155 = por %p153, %p154
      %p156 = scmp.ne.s32.totalorder %s144, %s145
      %p157 = scmp.eq.s32.totalorder %s25, 1
      %p158 = por %p156, %p157
      %p160 = scmp.ne.s32.totalorder %s145, %s159
      %p161 = scmp.eq.s32.totalorder %s25, 0
      %p162 = por %p160, %p161
      %s163 = ssub.s32 %s19, %s26
      %p164 = scmp.eq.s32.totalorder %s163, 0
      %s166 = sadd.s32 %s165, 1
      %s167 = scalar_select %p164, %s165, %s166
      %p170 = pneg %p164
      %p171 = scmp.eq.s32.totalorder %s19, 1
      %p172 = por %p170, %p171
      %p173 = scmp.ne.s32.totalorder %s165, %s168
      %p174 = scmp.eq.s32.totalorder %s19, 0
      %p175 = por %p173, %p174
      %p176 = scmp.ne.s32.totalorder %s165, %s168
      %p177 = scmp.eq.s32.totalorder %s24, 1
      %p178 = por %p176, %p177
      %p179 = scmp.ne.s32.totalorder %s168, %s169
      %p180 = scmp.eq.s32.totalorder %s24, 0
      %p181 = por %p179, %p180
      %p182 = scmp.ne.s32.totalorder %s168, %s169
      %p183 = scmp.eq.s32.totalorder %s25, 1
      %p184 = por %p182, %p183
      %p186 = scmp.ne.s32.totalorder %s169, %s185
      %p187 = scmp.eq.s32.totalorder %s25, 0
      %p188 = por %p186, %p187
      %p189 = scmp.le.s32.totalorder 1, %s19
      %p190 = scmp.lt.s32.totalorder %s19, 3
      %p191 = pnand %p189, %p190
      %p192 = pneg %p191
      // Predicated region
      $region9: #{tpu_custom_call.1} parent=5 // pred_check
        _
      $region10: #{tpu_custom_call.1} parent=5 // pred_check_branch
        %194 = sbr.rel (%p191) target = $region12
      $region11: #{tpu_custom_call.1} parent=5 // pred_region
        %s195 = ssub.s32 %s19, 1
        // Predicated region
        $region13: #{tpu_custom_call.1} parent=11 // pred_check
          %p196 = pneg %p92
        $region14: #{tpu_custom_call.1} parent=11 // pred_check_branch
          %198 = sbr.rel (%p196) target = $region16
        $region15: #{tpu_custom_call.1} parent=11 // pred_region
          %s200 = ssub.s32 1536, 1536
          %201 = vsyncadd [#allocation6], %s200
          %s202 = sshll.u32 [#allocation5], 4
          %s203 = int_to_ptr.vmem [resolvable:$true] %s202
          %208 = dma.hbm_to_vmem [thread:$0]  %s2, 1536, %s203, [#allocation6], 192, 192, 12
        $region16: #{tpu_custom_call.1} parent=11 // pred_fallthru
          _
        // Predicated region
        $region17: #{tpu_custom_call.1} parent=11 // pred_check
          %p209 = pneg %p113
        $region18: #{tpu_custom_call.1} parent=11 // pred_check_branch
          %211 = sbr.rel (%p209) target = $region20
        $region19: #{tpu_custom_call.1} parent=11 // pred_region
          %s213 = ssub.s32 3072, 3072
          %214 = vsyncadd [#allocation6], %s213
          %s215 = sshll.u32 [#allocation7], 4
          %s216 = int_to_ptr.vmem [resolvable:$true] %s215
          %221 = dma.hbm_to_vmem [thread:$0]  %s3, 3072, %s216, [#allocation6], 192, 192, 12
        $region20: #{tpu_custom_call.1} parent=11 // pred_fallthru
          _
        // Predicated region
        $region21: #{tpu_custom_call.1} parent=11 // pred_check
          %p222 = pneg %p134
        $region22: #{tpu_custom_call.1} parent=11 // pred_check_branch
          %224 = sbr.rel (%p222) target = $region24
        $region23: #{tpu_custom_call.1} parent=11 // pred_region
          _
        $region24: #{tpu_custom_call.1} parent=11 // pred_fallthru
          _
        // Predicated region
        $region25: #{tpu_custom_call.1} parent=11 // pred_check
          %p225 = pneg %p155
        $region26: #{tpu_custom_call.1} parent=11 // pred_check_branch
          %227 = sbr.rel (%p225) target = $region28
        $region27: #{tpu_custom_call.1} parent=11 // pred_region
          _
        $region28: #{tpu_custom_call.1} parent=11 // pred_fallthru
          _
      $region12: #{tpu_custom_call.1} parent=5 // pred_fallthru
        _
      %p228 = scmp.lt.s32.totalorder %s19, 2
      // Predicated region
      $region29: #{tpu_custom_call.1} parent=5 // pred_check
        %p229 = pneg %p228
      $region30: #{tpu_custom_call.1} parent=5 // pred_check_branch
        %231 = sbr.rel (%p229) target = $region32
      $region31: #{tpu_custom_call.1} parent=5 // pred_region
        // Predicated region
        $region33: #{tpu_custom_call.1} parent=31 // pred_check
          %p232 = pneg %p39
        $region34: #{tpu_custom_call.1} parent=31 // pred_check_branch
          %234 = sbr.rel (%p232) target = $region36
        $region35: #{tpu_custom_call.1} parent=31 // pred_region
          %p235 = scmp.lt.s32.totalorder %s19, 1
          %s236 = scalar_select %p235, %s19, 1
          %s237 = smul.addr %s236, 4
          %s238 = scalar_lea.vmem %s0, %s237
        $region36: #{tpu_custom_call.1} parent=31 // pred_fallthru
          _
        // Predicated region
        $region37: #{tpu_custom_call.1} parent=31 // pred_check
          %p239 = pneg %p65
        $region38: #{tpu_custom_call.1} parent=31 // pred_check_branch
          %241 = sbr.rel (%p239) target = $region40
        $region39: #{tpu_custom_call.1} parent=31 // pred_region
          %s242 = sand.u32 %s55, 1
          %s243 = scalar_lea.sflag [#allocation3], %s242
          %s244 = sand.u32 %s55, 1
          %s245 = smul.addr %s244, 8
          %s246 = scalar_lea.vmem [#allocation2], %s245
          %s248 = ssub.s32 128, 128
          %249 = vsyncadd %s243, %s248
          %s250 = smul.addr %s19, 128
          %s251 = scalar_lea.hbm %s1, %s250
          %s253 = sshll.u32 %s246, 4
          %s254 = int_to_ptr.vmem [resolvable:$true] %s253
          %256 = dma.hbm_to_vmem [thread:$0]  %s251, 128, %s254, %s243
        $region40: #{tpu_custom_call.1} parent=31 // pred_fallthru
          _
      $region32: #{tpu_custom_call.1} parent=5 // pred_fallthru
        _
      %p257 = scmp.le.s32.totalorder 1, %s19
      %p258 = scmp.lt.s32.totalorder %s19, 3
      %p259 = pnand %p257, %p258
      %p260 = pneg %p259
      // Predicated region
      $region41: #{tpu_custom_call.1} parent=5 // pred_check
        _
      $region42: #{tpu_custom_call.1} parent=5 // pred_check_branch
        %262 = sbr.rel (%p259) target = $region44
      $region43: #{tpu_custom_call.1} parent=5 // pred_region
        %s263 = ssub.s32 %s19, 1
        %s264 = sand.u32 %s58, 1
        %s265 = scalar_lea.sflag [#allocation3], %s264
        %s266 = sand.u32 %s58, 1
        %s267 = smul.addr %s266, 8
        %s268 = scalar_lea.vmem [#allocation2], %s267
        // Predicated region
        $region45: #{tpu_custom_call.1} parent=43 // pred_check
          %p269 = pneg %p71
        $region46: #{tpu_custom_call.1} parent=43 // pred_check_branch
          %271 = sbr.rel (%p269) target = $region48
        $region47: #{tpu_custom_call.1} parent=43 // pred_region
          %272 = dma.done %s265, 128
        $region48: #{tpu_custom_call.1} parent=43 // pred_fallthru
          _
        // Predicated region
        $region49: #{tpu_custom_call.1} parent=43 // pred_check
          %p273 = pneg %p92
        $region50: #{tpu_custom_call.1} parent=43 // pred_check_branch
          %275 = sbr.rel (%p273) target = $region52
        $region51: #{tpu_custom_call.1} parent=43 // pred_region
          %276 = dma.done [#allocation6], 1536
        $region52: #{tpu_custom_call.1} parent=43 // pred_fallthru
          _
        // Predicated region
        $region53: #{tpu_custom_call.1} parent=43 // pred_check
          %p277 = pneg %p113
        $region54: #{tpu_custom_call.1} parent=43 // pred_check_branch
          %279 = sbr.rel (%p277) target = $region56
        $region55: #{tpu_custom_call.1} parent=43 // pred_region
          %280 = dma.done [#allocation6], 3072
        $region56: #{tpu_custom_call.1} parent=43 // pred_fallthru
          _
        %p281 = scmp.lt.s32.totalorder %s24, 1
        %s282 = scalar_select %p281, %s24, 1
        %s283 = smul.addr %s282, 4
        %s284 = scalar_lea.vmem %s0, %s283
        %p285 = pneg %p45
        %p286 = pneg %p42
        %s287 = sand.u32 %s58, 1
        %s288 = scalar_lea.sflag [#allocation3], %s287
        %s289 = sand.u32 %s58, 1
        %s290 = smul.addr %s289, 8
        %s291 = scalar_lea.vmem [#allocation2], %s290
        %p292 = pneg %p71
        %p293 = pneg %p68
        %p294 = pneg %p92
        %p295 = pneg %p89
        %p296 = pneg %p113
        %p297 = pneg %p110
        %p298 = pneg %p134
        %p299 = pneg %p131
        %p300 = pneg %p155
        %p301 = pneg %p152
        %p302 = pneg %p181
        %p303 = pneg %p178
        %s304 = sand.u32 %s168, 1
        %s305 = scalar_lea.sflag [#allocation4], %s304
        %s306 = sand.u32 %s168, 1
        %s307 = smul.addr %s306, 8
        %s308 = scalar_lea.vmem [#allocation8], %s307
        %p309 = scmp.lt.s32.totalorder %s24, 1
        %s310 = scalar_select %p309, %s24, 1
        %s311 = smul.addr %s310, 4
        %s312 = scalar_lea.vmem %s0, %s311
        %v314 = vld [vmem:[%s268] sm:$0xff]
        %v315 = vld [vmem:[%s312] sm:$0xf]
        %v316 = vld [vmem:[#allocation5] sm:$0xff]
        %v317 = vld [vmem:[#allocation5 + $0x8] sm:$0xf]
        %v318 = vld [vmem:[#allocation5 + $0xc] sm:$0xff]
        %v319 = vld [vmem:[#allocation5 + $0x14] sm:$0xf]
        %v320 = vld [vmem:[#allocation5 + $0x18] sm:$0xff]
        %v321 = vld [vmem:[#allocation5 + $0x20] sm:$0xf]
        %v322 = vld [vmem:[#allocation5 + $0x24] sm:$0xff]
        %v323 = vld [vmem:[#allocation5 + $0x2c] sm:$0xf]
        %v324 = vld [vmem:[#allocation5 + $0x30] sm:$0xff]
        %v325 = vld [vmem:[#allocation5 + $0x38] sm:$0xf]
        %v326 = vld [vmem:[#allocation5 + $0x3c] sm:$0xff]
        %v327 = vld [vmem:[#allocation5 + $0x44] sm:$0xf]
        %v328 = vld [vmem:[#allocation5 + $0x48] sm:$0xff]
        %v329 = vld [vmem:[#allocation5 + $0x50] sm:$0xf]
        %v330 = vld [vmem:[#allocation5 + $0x54] sm:$0xff]
        %v331 = vld [vmem:[#allocation5 + $0x5c] sm:$0xf]
        %v332 = vpack.c.bf16 %v314, %v314
        %v333 = vld [vmem:[#allocation7] sm:$0xff]
        %v334 = vld [vmem:[#allocation7 + $0x8] sm:$0xf]
        %v335 = vld [vmem:[#allocation7 + $0xc] sm:$0xff]
        %v336 = vld [vmem:[#allocation7 + $0x14] sm:$0xf]
        %v337 = vld [vmem:[#allocation7 + $0x18] sm:$0xff]
        %v338 = vld [vmem:[#allocation7 + $0x20] sm:$0xf]
        %v339 = vld [vmem:[#allocation7 + $0x24] sm:$0xff]
        %v340 = vld [vmem:[#allocation7 + $0x2c] sm:$0xf]
        %v341 = vld [vmem:[#allocation7 + $0x30] sm:$0xff]
        %v342 = vld [vmem:[#allocation7 + $0x38] sm:$0xf]
        %v343 = vld [vmem:[#allocation7 + $0x3c] sm:$0xff]
        %v344 = vld [vmem:[#allocation7 + $0x44] sm:$0xf]
        %v345 = vld [vmem:[#allocation7 + $0x48] sm:$0xff]
        %v346 = vld [vmem:[#allocation7 + $0x50] sm:$0xf]
        %v347 = vld [vmem:[#allocation7 + $0x54] sm:$0xff]
        %v348 = vld [vmem:[#allocation7 + $0x5c] sm:$0xf]
        %v349 = vld [vmem:[#allocation7 + $0x60] sm:$0xff]
        %v350 = vld [vmem:[#allocation7 + $0x68] sm:$0xf]
        %v351 = vld [vmem:[#allocation7 + $0x6c] sm:$0xff]
        %v352 = vld [vmem:[#allocation7 + $0x74] sm:$0xf]
        %v353 = vld [vmem:[#allocation7 + $0x78] sm:$0xff]
        %v354 = vld [vmem:[#allocation7 + $0x80] sm:$0xf]
        %v355 = vld [vmem:[#allocation7 + $0x84] sm:$0xff]
        %v356 = vld [vmem:[#allocation7 + $0x8c] sm:$0xf]
        %v357 = vld [vmem:[#allocation7 + $0x90] sm:$0xff]
        %v358 = vld [vmem:[#allocation7 + $0x98] sm:$0xf]
        %v359 = vld [vmem:[#allocation7 + $0x9c] sm:$0xff]
        %v360 = vld [vmem:[#allocation7 + $0xa4] sm:$0xf]
        %v361 = vld [vmem:[#allocation7 + $0xa8] sm:$0xff]
        %v362 = vld [vmem:[#allocation7 + $0xb0] sm:$0xf]
        %v363 = vld [vmem:[#allocation7 + $0xb4] sm:$0xff]
        %v364 = vld [vmem:[#allocation7 + $0xbc] sm:$0xf]
        %v397 = vunpack.c.l.b16 %v333
        %v398 = vunpack.c.h.b16 %v333
        %v399 = vunpack.c.l.b16 %v334
        %v400 = vunpack.c.l.b16 %v335
        %v401 = vunpack.c.h.b16 %v335
        %v402 = vunpack.c.l.b16 %v336
        %v403 = vunpack.c.l.b16 %v337
        %v404 = vunpack.c.h.b16 %v337
        %v405 = vunpack.c.l.b16 %v338
        %v406 = vunpack.c.l.b16 %v339
        %v407 = vunpack.c.h.b16 %v339
        %v408 = vunpack.c.l.b16 %v340
        %v409 = vunpack.c.l.b16 %v341
        %v410 = vunpack.c.h.b16 %v341
        %v411 = vunpack.c.l.b16 %v342
        %v412 = vunpack.c.l.b16 %v343
        %v413 = vunpack.c.h.b16 %v343
        %v414 = vunpack.c.l.b16 %v344
        %v415 = vunpack.c.l.b16 %v345
        %v416 = vunpack.c.h.b16 %v345
        %v417 = vunpack.c.l.b16 %v346
        %v418 = vunpack.c.l.b16 %v347
        %v419 = vunpack.c.h.b16 %v347
        %v420 = vunpack.c.l.b16 %v348
        %v421 = vunpack.c.l.b16 %v349
        %v422 = vunpack.c.h.b16 %v349
        %v423 = vunpack.c.l.b16 %v350
        %v424 = vunpack.c.l.b16 %v351
        %v425 = vunpack.c.h.b16 %v351
        %v426 = vunpack.c.l.b16 %v352
        %v427 = vunpack.c.l.b16 %v353
        %v428 = vunpack.c.h.b16 %v353
        %v429 = vunpack.c.l.b16 %v354
        %v430 = vunpack.c.l.b16 %v355
        %v431 = vunpack.c.h.b16 %v355
        %v432 = vunpack.c.l.b16 %v356
        %v433 = vunpack.c.l.b16 %v357
        %v434 = vunpack.c.h.b16 %v357
        %v435 = vunpack.c.l.b16 %v358
        %v436 = vunpack.c.l.b16 %v359
        %v437 = vunpack.c.h.b16 %v359
        %v438 = vunpack.c.l.b16 %v360
        %v439 = vunpack.c.l.b16 %v361
        %v440 = vunpack.c.h.b16 %v361
        %v441 = vunpack.c.l.b16 %v362
        %v442 = vunpack.c.l.b16 %v363
        %v443 = vunpack.c.h.b16 %v363
        %v444 = vunpack.c.l.b16 %v364
        %v445 = vpack.c.b16 %v400, %v397
        %v446 = vpack.c.b16 %v401, %v398
        %v447 = vpack.c.b16 %v402, %v399
        %v448 = vpack.c.b16 %v406, %v403
        %v449 = vpack.c.b16 %v407, %v404
        %v450 = vpack.c.b16 %v408, %v405
        %v451 = vpack.c.b16 %v412, %v409
        %v452 = vpack.c.b16 %v413, %v410
        %v453 = vpack.c.b16 %v414, %v411
        %v454 = vpack.c.b16 %v418, %v415
        %v455 = vpack.c.b16 %v419, %v416
        %v456 = vpack.c.b16 %v420, %v417
        %v457 = vpack.c.b16 %v424, %v421
        %v458 = vpack.c.b16 %v425, %v422
        %v459 = vpack.c.b16 %v426, %v423
        %v460 = vpack.c.b16 %v430, %v427
        %v461 = vpack.c.b16 %v431, %v428
        %v462 = vpack.c.b16 %v432, %v429
        %v463 = vpack.c.b16 %v436, %v433
        %v464 = vpack.c.b16 %v437, %v434
        %v465 = vpack.c.b16 %v438, %v435
        %v466 = vpack.c.b16 %v442, %v439
        %v467 = vpack.c.b16 %v443, %v440
        %v468 = vpack.c.b16 %v444, %v441
        %493 = vmatprep.subr.bf16.mxu0 %v446
        %494 = vmatpush1.bf16.msra.mxu0 %v445
        %495 = vmatprep.subr.bf16.mxu0 %v449
        %496 = vmatpush1.bf16.msra.mxu0 %v448
        %497 = vmatprep.subr.bf16.mxu0 %v452
        %498 = vmatpush1.bf16.msra.mxu0 %v451
        %499 = vmatprep.subr.bf16.mxu0 %v455
        %500 = vmatpush1.bf16.msra.mxu0 %v454
        %501 = vmatprep.subr.bf16.mxu0 %v458
        %502 = vmatpush1.bf16.msra.mxu0 %v457
        %503 = vmatprep.subr.bf16.mxu0 %v461
        %504 = vmatpush1.bf16.msra.mxu0 %v460
        %505 = vmatprep.subr.bf16.mxu0 %v464
        %506 = vmatpush1.bf16.msra.mxu0 %v463
        %507 = vmatprep.subr.bf16.mxu0 %v467
        %508 = vmatpush1.bf16.msra.mxu0 %v466
        %509 = vmatprep.subr.bf16.mxu0 0
        %510 = vmatpush1.bf16.msra.mxu0 0
        %511 = vmatprep.subr.bf16.mxu0 0
        %512 = vmatpush1.bf16.msra.mxu0 0
        %513 = vmatprep.subr.bf16.mxu0 0
        %514 = vmatpush1.bf16.msra.mxu0 0
        %515 = vmatprep.subr.bf16.mxu0 0
        %516 = vmatpush1.bf16.msra.mxu0 0
        %517 = vmatprep.subr.bf16.mxu0 0
        %518 = vmatpush1.bf16.msra.mxu0 0
        %519 = vmatprep.subr.bf16.mxu0 0
        %520 = vmatpush1.bf16.msra.mxu0 0
        %521 = vmatprep.subr.bf16.mxu0 0
        %522 = vmatpush1.bf16.msra.mxu0 0
        %523 = vmatprep.subr.bf16.mxu0 0
        %524 = vmatpush1.bf16.msra.mxu0 0
        %525 = vmatprep.mubr.bf16.mxu0 0
        %526 = vmatmul.mubr.bf16.gmra.mrb[0].mxu0 %v332
        %v527 = vpop.f32.mrb[0].mxu0
        %v528 = vadd.f32 0.0, %v527
        %v529 = vpop.f32.mrb[0].mxu0
        %v530 = vadd.f32 0.0, %v529
        %v531 = vpop.f32.mrb[0].mxu0
        %v532 = vpop.f32.mrb[0].mxu0
        %533 = vdwg.mxu0
        %534 = vmatprep.subr.bf16.mxu0 0
        %535 = vmatpush1.bf16.msra.mxu0 %v447
        %536 = vmatprep.subr.bf16.mxu0 0
        %537 = vmatpush1.bf16.msra.mxu0 %v450
        %538 = vmatprep.subr.bf16.mxu0 0
        %539 = vmatpush1.bf16.msra.mxu0 %v453
        %540 = vmatprep.subr.bf16.mxu0 0
        %541 = vmatpush1.bf16.msra.mxu0 %v456
        %542 = vmatprep.subr.bf16.mxu0 0
        %543 = vmatpush1.bf16.msra.mxu0 %v459
        %544 = vmatprep.subr.bf16.mxu0 0
        %545 = vmatpush1.bf16.msra.mxu0 %v462
        %546 = vmatprep.subr.bf16.mxu0 0
        %547 = vmatpush1.bf16.msra.mxu0 %v465
        %548 = vmatprep.subr.bf16.mxu0 0
        %549 = vmatpush1.bf16.msra.mxu0 %v468
        %550 = vmatprep.subr.bf16.mxu0 0
        %551 = vmatpush1.bf16.msra.mxu0 0
        %552 = vmatprep.subr.bf16.mxu0 0
        %553 = vmatpush1.bf16.msra.mxu0 0
        %554 = vmatprep.subr.bf16.mxu0 0
        %555 = vmatpush1.bf16.msra.mxu0 0
        %556 = vmatprep.subr.bf16.mxu0 0
        %557 = vmatpush1.bf16.msra.mxu0 0
        %558 = vmatprep.subr.bf16.mxu0 0
        %559 = vmatpush1.bf16.msra.mxu0 0
        %560 = vmatprep.subr.bf16.mxu0 0
        %561 = vmatpush1.bf16.msra.mxu0 0
        %562 = vmatprep.subr.bf16.mxu0 0
        %563 = vmatpush1.bf16.msra.mxu0 0
        %564 = vmatprep.subr.bf16.mxu0 0
        %565 = vmatpush1.bf16.msra.mxu0 0
        %566 = vmatprep.mubr.bf16.mxu0 0
        %567 = vmatmul.mubr.bf16.gmra.mrb[0].mxu0 %v332
        %v568 = vpop.f32.mrb[0].mxu0
        %v569 = vadd.f32 0.0, %v568
        %v570 = vpop.f32.mrb[0].mxu0
        %v571 = vpop.f32.mrb[0].mxu0
        %v572 = vpop.f32.mrb[0].mxu0
        %573 = vdwg.mxu0
        %v590 = vunpack.c.l.b16 %v316
        %v591 = vunpack.c.h.b16 %v316
        %v592 = vunpack.c.l.b16 %v317
        %v593 = vunpack.c.l.b16 %v318
        %v594 = vunpack.c.h.b16 %v318
        %v595 = vunpack.c.l.b16 %v319
        %v596 = vunpack.c.l.b16 %v320
        %v597 = vunpack.c.h.b16 %v320
        %v598 = vunpack.c.l.b16 %v321
        %v599 = vunpack.c.l.b16 %v322
        %v600 = vunpack.c.h.b16 %v322
        %v601 = vunpack.c.l.b16 %v323
        %v602 = vunpack.c.l.b16 %v324
        %v603 = vunpack.c.h.b16 %v324
        %v604 = vunpack.c.l.b16 %v325
        %v605 = vunpack.c.l.b16 %v326
        %v606 = vunpack.c.h.b16 %v326
        %v607 = vunpack.c.l.b16 %v327
        %v608 = vunpack.c.l.b16 %v328
        %v609 = vunpack.c.h.b16 %v328
        %v610 = vunpack.c.l.b16 %v329
        %v611 = vunpack.c.l.b16 %v330
        %v612 = vunpack.c.h.b16 %v330
        %v613 = vunpack.c.l.b16 %v331
        %v614 = vpack.c.b16 %v593, %v590
        %v615 = vpack.c.b16 %v594, %v591
        %v616 = vpack.c.b16 %v595, %v592
        %v617 = vpack.c.b16 %v599, %v596
        %v618 = vpack.c.b16 %v600, %v597
        %v619 = vpack.c.b16 %v601, %v598
        %v620 = vpack.c.b16 %v605, %v602
        %v621 = vpack.c.b16 %v606, %v603
        %v622 = vpack.c.b16 %v607, %v604
        %v623 = vpack.c.b16 %v611, %v608
        %v624 = vpack.c.b16 %v612, %v609
        %v625 = vpack.c.b16 %v613, %v610
        %vm638 = vcmask 523264
        %v640 = vsel %vm638, %v315, 0
        %642 = vmatprep.subr.bf16.mxu0 %v615
        %643 = vmatpush1.bf16.msra.mxu0 %v614
        %644 = vmatprep.subr.bf16.mxu0 %v618
        %645 = vmatpush1.bf16.msra.mxu0 %v617
        %646 = vmatprep.subr.bf16.mxu0 %v621
        %647 = vmatpush1.bf16.msra.mxu0 %v620
        %648 = vmatprep.subr.bf16.mxu0 %v624
        %649 = vmatpush1.bf16.msra.mxu0 %v623
        %650 = vmatprep.subr.bf16.mxu0 0
        %651 = vmatpush1.bf16.msra.mxu0 0
        %652 = vmatprep.subr.bf16.mxu0 0
        %653 = vmatpush1.bf16.msra.mxu0 0
        %654 = vmatprep.subr.bf16.mxu0 0
        %655 = vmatpush1.bf16.msra.mxu0 0
        %656 = vmatprep.subr.bf16.mxu0 0
        %657 = vmatpush1.bf16.msra.mxu0 0
        %658 = vmatprep.subr.bf16.mxu0 0
        %659 = vmatpush1.bf16.msra.mxu0 0
        %660 = vmatprep.subr.bf16.mxu0 0
        %661 = vmatpush1.bf16.msra.mxu0 0
        %662 = vmatprep.subr.bf16.mxu0 0
        %663 = vmatpush1.bf16.msra.mxu0 0
        %664 = vmatprep.subr.bf16.mxu0 0
        %665 = vmatpush1.bf16.msra.mxu0 0
        %666 = vmatprep.subr.bf16.mxu0 0
        %667 = vmatpush1.bf16.msra.mxu0 0
        %668 = vmatprep.subr.bf16.mxu0 0
        %669 = vmatpush1.bf16.msra.mxu0 0
        %670 = vmatprep.subr.bf16.mxu0 0
        %671 = vmatpush1.bf16.msra.mxu0 0
        %672 = vmatprep.subr.bf16.mxu0 0
        %673 = vmatpush1.bf16.msra.mxu0 0
        %674 = vmatprep.mubr.bf16.mxu0 0
        %675 = vmatmul.mubr.bf16.gmra.mrb[0].mxu0 %v640
        %v676 = vpop.f32.mrb[0].mxu0
        %v677 = vadd.f32 %v528, %v676
        %v678 = vpop.f32.mrb[0].mxu0
        %v679 = vadd.f32 %v530, %v678
        %v680 = vpop.f32.mrb[0].mxu0
        %v681 = vpop.f32.mrb[0].mxu0
        %682 = vdwg.mxu0
        %683 = vmatprep.subr.bf16.mxu0 0
        %684 = vmatpush1.bf16.msra.mxu0 %v616
        %685 = vmatprep.subr.bf16.mxu0 0
        %686 = vmatpush1.bf16.msra.mxu0 %v619
        %687 = vmatprep.subr.bf16.mxu0 0
        %688 = vmatpush1.bf16.msra.mxu0 %v622
        %689 = vmatprep.subr.bf16.mxu0 0
        %690 = vmatpush1.bf16.msra.mxu0 %v625
        %691 = vmatprep.subr.bf16.mxu0 0
        %692 = vmatpush1.bf16.msra.mxu0 0
        %693 = vmatprep.subr.bf16.mxu0 0
        %694 = vmatpush1.bf16.msra.mxu0 0
        %695 = vmatprep.subr.bf16.mxu0 0
        %696 = vmatpush1.bf16.msra.mxu0 0
        %697 = vmatprep.subr.bf16.mxu0 0
        %698 = vmatpush1.bf16.msra.mxu0 0
        %699 = vmatprep.subr.bf16.mxu0 0
        %700 = vmatpush1.bf16.msra.mxu0 0
        %701 = vmatprep.subr.bf16.mxu0 0
        %702 = vmatpush1.bf16.msra.mxu0 0
        %703 = vmatprep.subr.bf16.mxu0 0
        %704 = vmatpush1.bf16.msra.mxu0 0
        %705 = vmatprep.subr.bf16.mxu0 0
        %706 = vmatpush1.bf16.msra.mxu0 0
        %707 = vmatprep.subr.bf16.mxu0 0
        %708 = vmatpush1.bf16.msra.mxu0 0
        %709 = vmatprep.subr.bf16.mxu0 0
        %710 = vmatpush1.bf16.msra.mxu0 0
        %711 = vmatprep.subr.bf16.mxu0 0
        %712 = vmatpush1.bf16.msra.mxu0 0
        %713 = vmatprep.subr.bf16.mxu0 0
        %714 = vmatpush1.bf16.msra.mxu0 0
        %715 = vmatprep.mubr.bf16.mxu0 0
        %716 = vmatmul.mubr.bf16.gmra.mrb[0].mxu0 %v640
        %v717 = vpop.f32.mrb[0].mxu0
        %v718 = vadd.f32 %v569, %v717
        %v719 = vpop.f32.mrb[0].mxu0
        %v720 = vpop.f32.mrb[0].mxu0
        %v721 = vpop.f32.mrb[0].mxu0
        %722 = vdwg.mxu0
        %v723 = vadd.f32 %v677, %v679
        %v724 = vadd.f32 %v723, %v718
        %725 = vadd.xlane.f32.xlu0 %v724
        %v726 = vpop.xlane.xlu0 %725
        %v727 = vrcp.pop 384.0
        %v728 = vmul.f32 %v726, %v727
        %v729 = vsub.f32 %v677, %v728
        %v730 = vsub.f32 %v679, %v728
        %v731 = vsub.f32 %v718, %v728
        %v732 = vmul.f32 %v729, %v729
        %v733 = vmul.f32 %v730, %v730
        %v734 = vmul.f32 %v731, %v731
        %v735 = vadd.f32 %v732, %v733
        %v736 = vadd.f32 %v735, %v734
        %737 = vadd.xlane.f32.xlu0 %v736
        %v738 = vpop.xlane.xlu0 %737
        %v739 = vmul.f32 %v738, %v727
        %v740 = vadd.f32 %v739, 0.001
        %v741 = vrsqrt.pop %v740
        %v742 = vmul.f32 %v729, %v741
        %v743 = vmul.f32 %v730, %v741
        %v744 = vmul.f32 %v731, %v741
        %v745 = vld [vmem:[%s4] sm:$0x7]
        %v747 = vlaneseq
        %v748 = vshrl.u32 %v747, 7
        %v749 = vsub.s32 0, %v748
        %v750 = vrot.slane %v745, %v749
        %v751 = vlaneseq
        %v752 = vshrl.u32 %v751, 7
        %v753 = vsub.s32 1, %v752
        %v754 = vrot.slane %v745, %v753
        %v755 = vlaneseq
        %v756 = vshrl.u32 %v755, 7
        %v757 = vsub.s32 2, %v756
        %v758 = vrot.slane %v745, %v757
        %v762 = vmul.f32 %v742, %v750
        %v763 = vmul.f32 %v743, %v754
        %v764 = vmul.f32 %v744, %v758
        %v765 = vld [vmem:[%s5] sm:$0x7]
        %v767 = vlaneseq
        %v768 = vshrl.u32 %v767, 7
        %v769 = vsub.s32 0, %v768
        %v770 = vrot.slane %v765, %v769
        %v771 = vlaneseq
        %v772 = vshrl.u32 %v771, 7
        %v773 = vsub.s32 1, %v772
        %v774 = vrot.slane %v765, %v773
        %v775 = vlaneseq
        %v776 = vshrl.u32 %v775, 7
        %v777 = vsub.s32 2, %v776
        %v778 = vrot.slane %v765, %v777
        %v782 = vadd.f32 %v762, %v770
        %v783 = vadd.f32 %v763, %v774
        %v784 = vadd.f32 %v764, %v778
        %v785 = vxor.u32 %v782, 2147483648
        %v786 = vmul.f32 %v785, 1.442695
        %v787 = vpow.pop %v786
        %v788 = vadd.f32 %v787, 1.0
        %v789 = vrcp.pop %v788
        %v790 = vmul.f32 1.0, %v789
        %v791 = vmul.f32 %v790, %v783
        %v792 = vtanh.pop %v791
        %v793 = vsub.f32 %v784, 1.0
        %v794 = vxor.u32 %v793, 2147483648
        %v795 = vmul.f32 %v794, 1.442695
        %v796 = vpow.pop %v795
        %v797 = vadd.f32 %v796, 1.0
        %v798 = vrcp.pop %v797
        %v799 = vmul.f32 1.0, %v798
        %v800 = vmul.f32 %v799, %v792
        %v801 = vsub.f32 1.0, %v799
        %v802 = vmul.f32 %v801, %v314
        %v803 = vadd.f32 %v800, %v802
        %804 = vst [vmem:[%s308] sm:$0xff] %v803
        %s805 = sand.u32 %s168, 1
        %s806 = scalar_lea.sflag [#allocation4], %s805
        %s807 = sand.u32 %s168, 1
        %s808 = smul.addr %s807, 8
        %s809 = scalar_lea.vmem [#allocation8], %s808
        // Predicated region
        $region57: #{tpu_custom_call.1} parent=43 // pred_check
          %p810 = pneg %p178
        $region58: #{tpu_custom_call.1} parent=43 // pred_check_branch
          %812 = sbr.rel (%p810) target = $region60
        $region59: #{tpu_custom_call.1} parent=43 // pred_region
          %s814 = ssub.s32 128, 128
          %815 = vsyncadd %s806, %s814
          %s816 = smul.addr %s24, 128
          %s817 = scalar_lea.hbm %s6, %s816
          %s819 = sshll.u32 %s809, 4
          %s820 = int_to_ptr.vmem [resolvable:$true] %s819
          %822 = dma.vmem_to_hbm [thread:$0]  %s820, 128, %s817, %s806
        $region60: #{tpu_custom_call.1} parent=43 // pred_fallthru
          _
      $region44: #{tpu_custom_call.1} parent=5 // pred_fallthru
        _
      %p823 = scmp.le.s32.totalorder 2, %s19
      // Predicated region
      $region61: #{tpu_custom_call.1} parent=5 // pred_check
        %p824 = pneg %p823
      $region62: #{tpu_custom_call.1} parent=5 // pred_check_branch
        %826 = sbr.rel (%p824) target = $region64
      $region63: #{tpu_custom_call.1} parent=5 // pred_region
        %s827 = ssub.s32 %s19, 2
        // Predicated region
        $region65: #{tpu_custom_call.1} parent=63 // pred_check
          %p828 = pneg %p184
        $region66: #{tpu_custom_call.1} parent=63 // pred_check_branch
          %830 = sbr.rel (%p828) target = $region68
        $region67: #{tpu_custom_call.1} parent=63 // pred_region
          %s831 = sand.u32 %s169, 1
          %s832 = scalar_lea.sflag [#allocation4], %s831
          %s833 = sand.u32 %s169, 1
          %s834 = smul.addr %s833, 8
          %s835 = scalar_lea.vmem [#allocation8], %s834
          %836 = dma.done %s832, 128
        $region68: #{tpu_custom_call.1} parent=63 // pred_fallthru
          _
      $region64: #{tpu_custom_call.1} parent=5 // pred_fallthru
        _
    $region6: #{tpu_custom_call.1} parent=1 // loop_footer
      %s23 = sadd.s32 1, %s19
    $region7: #{tpu_custom_call.1} parent=1 // loop_footer_branch
      %18 = sbr.rel target = $region3
    $region8: #{tpu_custom_call.1} parent=1 // loop_exit
      _
    %837 = vsyncpa [#allocation3], 1
    %s838 = scalar_lea.sflag [#allocation3], 1
    %839 = vsyncpa %s838, 1
    %840 = vsyncpa [#allocation6], 1
    %841 = vsyncpa [#allocation4], 1
    %s842 = scalar_lea.sflag [#allocation4], 1
    %843 = vsyncpa %s842, 1

</llo_original>
